<compile_context>
chip_gen: v7x
topology: tpu7x:2x2x1
jax: 0.10.0
libtpu: 0.0.40
codegen_flags: <defaults>
</compile_context>

<pallas_src>
import functools

import jax
import jax.numpy as jnp
from jax.experimental import pallas as pl
from jax.experimental.pallas import tpu as pltpu

BN_EPS = 1e-5


def _round_up(x, m):
    return (x + m - 1) // m * m


def _vmem_limit_bytes():
    # Generation-aware VMEM cap: ~60% of physical (v5e/v6e 128 MiB -> ~77 MiB,
    # v7x 64 MiB -> ~38 MiB), falling back to a safe 40 MiB.
    try:
        info = pltpu.get_tpu_info()
        cap = getattr(info, "vmem_capacity_bytes", None)
        if cap:
            return int(min(cap * 0.6, 100 * 1024 * 1024))
    except Exception:
        pass
    return 40 * 1024 * 1024


VMEM_LIMIT = _vmem_limit_bytes()


def _pick_hw_tile(hw, cap=512):
    """Largest HW tile <= cap that divides hw (tile-first, multiple of 8)."""
    if hw <= cap:
        return hw
    for t in range(cap - cap % 8, 7, -8):
        if hw % t == 0:
            return t
    return hw


def _pick_cout_tile(cp):
    # 256-wide output tiles keep the v6e/v7x 2x256^2 MXU full when channels
    # allow; 128 otherwise (cp is always a multiple of 128).
    return 256 if cp % 256 == 0 else 128


# ----------------------------------------------------------------------------
# XLA-side prep: spatial zero-pad + stride phase split, BN folding, weights
# ----------------------------------------------------------------------------
def _phase_decompose(x, stride):
    """Pad spatially and split into stride phases.

    Returns (phases, taps, P, Hq, Wq, Ho, Wo) where phases is (N*P, Hq, Wq, C)
    and taps[t] = (phase, row_off, col_off) so that tap t of the 3x3 conv
    reads phases[n*P + phase, row_off:row_off+Ho, col_off:col_off+Wo, :].
    """
    N, H, W, C = x.shape
    xp = jnp.pad(x, ((0, 0), (1, 1), (1, 1), (0, 0)))
    if stride == 1:
        Ho, Wo, Hq, Wq, P = H, W, H + 2, W + 2, 1
        phases = xp
        taps = tuple((0, kh, kw) for kh in range(3) for kw in range(3))
    else:
        assert stride == 2 and H % 2 == 0 and W % 2 == 0
        Ho, Wo = H // 2, W // 2
        Hq, Wq, P = Ho + 1, Wo + 1, 4
        ph = xp.reshape(N, Hq, 2, Wq, 2, C).transpose(0, 2, 4, 1, 3, 5)
        phases = ph.reshape(N * 4, Hq, Wq, C)
        taps = tuple(((kh % 2) * 2 + (kw % 2), kh // 2, kw // 2)
                     for kh in range(3) for kw in range(3))
    return phases, taps, P, Hq, Wq, Ho, Wo


def _bn_fold(gamma, beta, mean, var):
    scale = gamma * jax.lax.rsqrt(var + BN_EPS)
    return scale.astype(jnp.float32), (beta - mean * scale).astype(jnp.float32)


def _conv3x3_weight(w_oihw, scale, cin_pad, cout_pad):
    """(O,I,3,3) -> (9*cin_pad, cout_pad) bf16 with the BN scale folded in."""
    O, I, _, _ = w_oihw.shape
    w = jnp.transpose(w_oihw, (2, 3, 1, 0)) * scale[None, None, None, :]
    w = jnp.pad(w, ((0, 0), (0, 0), (0, cin_pad - I), (0, cout_pad - O)))
    return w.reshape(9 * cin_pad, cout_pad).astype(jnp.bfloat16)


def _pad1d(v, n):
    v = jnp.asarray(v, jnp.float32)
    return jnp.pad(v, (0, n - v.shape[0]))


# ----------------------------------------------------------------------------
# Kernel 1: fused 3x3 conv (9 in-kernel taps) + folded BN (+ReLU) + SE pool
# ----------------------------------------------------------------------------
def _conv3x3_bn_kernel(x_ref, w_ref, b_ref, o_ref, pool_ref, *,
                       taps, ho, wo, apply_relu, inv_hw):
    cin = x_ref.shape[-1]
    tco = w_ref.shape[-1]
    acc = jnp.zeros((ho * wo, tco), jnp.float32)
    for t, (p, ro, co) in enumerate(taps):
        a = x_ref[p, ro:ro + ho, co:co + wo, :]          # (ho, wo, cin) bf16
        a = a.reshape(ho * wo, cin)
        acc = acc + jnp.dot(a, w_ref[t * cin:(t + 1) * cin, :],
                            preferred_element_type=jnp.float32)
    res = acc + b_ref[...]                                # BN (scale in weights)
    # per-channel spatial mean of the pre-ReLU output (used by squeeze-excite)
    pool_ref[0] = jnp.sum(res, axis=0, keepdims=True) * inv_hw
    if apply_relu:
        res = jnp.maximum(res, 0.0)
    o_ref[0] = res.astype(o_ref.dtype)


def conv3x3_bn(x, w_oihw, gamma, beta, mean, var, *, stride, apply_relu, cp,
               out_dtype=jnp.bfloat16):
    """Fused 3x3 conv (padding 1) + inference BatchNorm (+ReLU).

    x: (N, H, W, Cx) bf16 NHWC.  Cx may exceed the logical input channel count
    (zero-padded lanes from a previous block); weight rows are padded to match.
    Returns (out (N, Ho*Wo, cp), pooled (N, 1, cp) f32, Ho, Wo).
    """
    N, H, W, Cx = x.shape
    phases, taps, P, Hq, Wq, Ho, Wo = _phase_decompose(x.astype(jnp.bfloat16),
                                                       stride)
    scale, bias = _bn_fold(gamma, beta, mean, var)
    wmat = _conv3x3_weight(w_oihw, scale, Cx, cp)
    biasv = _pad1d(bias, cp).reshape(1, cp)
    tco = _pick_cout_tile(cp)
    hw = Ho * Wo
    out_bytes = jnp.dtype(out_dtype).itemsize
    kernel = functools.partial(_conv3x3_bn_kernel, taps=taps, ho=Ho, wo=Wo,
                               apply_relu=apply_relu, inv_hw=1.0 / hw)
    out, pooled = pl.pallas_call(
        kernel,
        out_shape=(jax.ShapeDtypeStruct((N, hw, cp), out_dtype),
                   jax.ShapeDtypeStruct((N, 1, cp), jnp.float32)),
        grid=(N, cp // tco),
        in_specs=[
            pl.BlockSpec((P, Hq, Wq, Cx), lambda n, j: (n, 0, 0, 0)),
            pl.BlockSpec((9 * Cx, tco), lambda n, j: (0, j)),
            pl.BlockSpec((1, tco), lambda n, j: (0, j)),
        ],
        out_specs=(
            pl.BlockSpec((1, hw, tco), lambda n, j: (n, 0, j)),
            pl.BlockSpec((1, 1, tco), lambda n, j: (n, 0, j)),
        ),
        compiler_params=pltpu.CompilerParams(
            dimension_semantics=("parallel", "parallel"),
            vmem_limit_bytes=VMEM_LIMIT),
        cost_estimate=pl.CostEstimate(
            flops=2 * N * hw * 9 * Cx * cp,
            transcendentals=0,
            bytes_accessed=(N * P * Hq * Wq * Cx * 2 * (cp // tco)
                            + N * 9 * Cx * cp * 2
                            + N * hw * cp * out_bytes + N * cp * 4)),
    )(phases, wmat, biasv)
    return out, pooled, Ho, Wo


# ----------------------------------------------------------------------------
# Kernel 2: squeeze-excite apply + (fused projection / identity) shortcut
#           + residual add + ReLU, tiled over (batch, HW)
# ----------------------------------------------------------------------------
def _se_scale(pool_ref, w1t_ref, b1_ref, w2_ref, b2_ref):
    # SE MLP on the VPU: broadcast-mul + reductions (no tiny-M MXU matmuls).
    pooled = pool_ref[0]                                               # (1, Cp)
    h = jnp.sum(pooled * w1t_ref[...], axis=1, keepdims=True) + b1_ref[...]
    h = jnp.maximum(h, 0.0)                                            # (Hh, 1)
    return jax.nn.sigmoid(jnp.sum(h * w2_ref[...], axis=0, keepdims=True)
                          + b2_ref[...])                               # (1, Cp)


def _se_res_proj_kernel(out2_ref, pool_ref, xs_ref, wsc_ref, bs_ref,
                        w1t_ref, b1_ref, w2_ref, b2_ref, o_ref):
    s = _se_scale(pool_ref, w1t_ref, b1_ref, w2_ref, b2_ref)
    sc = jnp.dot(xs_ref[0], wsc_ref[...],
                 preferred_element_type=jnp.float32) + bs_ref[...]
    out2 = out2_ref[0].astype(jnp.float32)
    o_ref[0] = jnp.maximum(out2 * s + sc, 0.0).astype(o_ref.dtype)


def _se_res_id_kernel(out2_ref, pool_ref, sc_ref,
                      w1t_ref, b1_ref, w2_ref, b2_ref, o_ref):
    s = _se_scale(pool_ref, w1t_ref, b1_ref, w2_ref, b2_ref)
    out2 = out2_ref[0].astype(jnp.float32)
    sc = sc_ref[0].astype(jnp.float32)
    if sc.shape[-1] < out2.shape[-1]:       # pad shortcut lanes in-kernel
        sc = jnp.concatenate(
            [sc, jnp.zeros((sc.shape[0], out2.shape[-1] - sc.shape[-1]),
                           jnp.float32)], axis=-1)
    o_ref[0] = jnp.maximum(out2 * s + sc, 0.0).astype(o_ref.dtype)


def _se_weight_specs(cp, hh):
    return [
        pl.BlockSpec((hh, cp), lambda n, h: (0, 0)),
        pl.BlockSpec((hh, 1), lambda n, h: (0, 0)),
        pl.BlockSpec((hh, cp), lambda n, h: (0, 0)),
        pl.BlockSpec((1, cp), lambda n, h: (0, 0)),
    ]


def se_residual_proj(out2, pooled, xs, wsc, bs, w1t, b1, w2, b2,
                     out_dtype=jnp.bfloat16):
    N, HW, Cp = out2.shape
    Cx = xs.shape[-1]
    Hh = w1t.shape[0]
    thw = _pick_hw_tile(HW)
    return pl.pallas_call(
        _se_res_proj_kernel,
        out_shape=jax.ShapeDtypeStruct((N, HW, Cp), out_dtype),
        grid=(N, HW // thw),
        in_specs=[
            pl.BlockSpec((1, thw, Cp), lambda n, h: (n, h, 0)),
            pl.BlockSpec((1, 1, Cp), lambda n, h: (n, 0, 0)),
            pl.BlockSpec((1, thw, Cx), lambda n, h: (n, h, 0)),
            pl.BlockSpec((Cx, Cp), lambda n, h: (0, 0)),
            pl.BlockSpec((1, Cp), lambda n, h: (0, 0)),
        ] + _se_weight_specs(Cp, Hh),
        out_specs=pl.BlockSpec((1, thw, Cp), lambda n, h: (n, h, 0)),
        compiler_params=pltpu.CompilerParams(
            dimension_semantics=("parallel", "parallel"),
            vmem_limit_bytes=VMEM_LIMIT),
        cost_estimate=pl.CostEstimate(
            flops=2 * N * HW * Cx * Cp + 8 * N * HW * Cp,
            transcendentals=2 * N * (HW // thw) * Cp,
            bytes_accessed=N * HW * (2 * Cp + Cx) * 2 + N * Cx * Cp * 2),
    )(out2, pooled, xs, wsc, bs, w1t, b1, w2, b2)


def se_residual_identity(out2, pooled, sc, w1t, b1, w2, b2,
                         out_dtype=jnp.bfloat16):
    N, HW, Cp = out2.shape
    Csc = sc.shape[-1]
    Hh = w1t.shape[0]
    thw = _pick_hw_tile(HW)
    return pl.pallas_call(
        _se_res_id_kernel,
        out_shape=jax.ShapeDtypeStruct((N, HW, Cp), out_dtype),
        grid=(N, HW // thw),
        in_specs=[
            pl.BlockSpec((1, thw, Cp), lambda n, h: (n, h, 0)),
            pl.BlockSpec((1, 1, Cp), lambda n, h: (n, 0, 0)),
            pl.BlockSpec((1, thw, Csc), lambda n, h: (n, h, 0)),
        ] + _se_weight_specs(Cp, Hh),
        out_specs=pl.BlockSpec((1, thw, Cp), lambda n, h: (n, h, 0)),
        compiler_params=pltpu.CompilerParams(
            dimension_semantics=("parallel", "parallel"),
            vmem_limit_bytes=VMEM_LIMIT),
        cost_estimate=pl.CostEstimate(
            flops=8 * N * HW * Cp,
            transcendentals=2 * N * (HW // thw) * Cp,
            bytes_accessed=N * HW * (2 * Cp + Csc) * 2),
    )(out2, pooled, sc, w1t, b1, w2, b2)


# ----------------------------------------------------------------------------
# Block assembly (NHWC / padded-C / bf16 between blocks) and NCHW wrapper
# ----------------------------------------------------------------------------
def basic_block_nhwc(x, p, in_planes, planes, stride):
    """SE-BasicBlock on NHWC bf16 activations.

    x: (N, H, W, Cx) bf16 with Cx >= in_planes; lanes beyond in_planes must be
    zero (padding from a previous block).  Returns (N, Ho, Wo, cp) bf16 with
    cp = round_up(planes, 128); padded output lanes are exactly zero.
    """
    N, H, W, Cx = x.shape
    assert Cx >= in_planes
    cp = _round_up(planes, 128)
    hidden = max(planes // 16, 1)
    hh = _round_up(hidden, 8)

    # conv1 + bn1 + relu  (stride 1 or 2)
    out1, _, Ho, Wo = conv3x3_bn(
        x, p["conv1_w"], p["bn1_g"], p["bn1_b"], p["bn1_m"], p["bn1_v"],
        stride=stride, apply_relu=True, cp=cp)
    out1 = out1.reshape(N, Ho, Wo, cp)

    # conv2 + bn2 (no relu); also emits per-channel spatial means for SE
    out2, pooled, _, _ = conv3x3_bn(
        out1, p["conv2_w"], p["bn2_g"], p["bn2_b"], p["bn2_m"], p["bn2_v"],
        stride=1, apply_relu=False, cp=cp)

    # SE MLP weights in VPU-friendly layouts (hidden dim padded to 8 sublanes)
    w1t = jnp.pad(p["fc1_w"][:, :, 0, 0],
                  ((0, hh - hidden), (0, cp - planes))).astype(jnp.float32)
    b1v = _pad1d(p["fc1_b"], hh).reshape(hh, 1)
    w2t = jnp.pad(p["fc2_w"][:, :, 0, 0].T,
                  ((0, hh - hidden), (0, cp - planes))).astype(jnp.float32)
    b2v = _pad1d(p["fc2_b"], cp).reshape(1, cp)

    if stride != 1 or in_planes != planes:
        # Projection shortcut: 1x1 strided conv + folded BN fused into the
        # SE / residual kernel (no separate HBM round trip).
        xs = x if stride == 1 else x[:, ::stride, ::stride, :]
        xs = xs.reshape(N, Ho * Wo, Cx)
        ss, sb = _bn_fold(p["sc_bn_g"], p["sc_bn_b"], p["sc_bn_m"], p["sc_bn_v"])
        wsc = p["sc_conv_w"][:, :, 0, 0].T * ss[None, :]
        wsc = jnp.pad(wsc, ((0, Cx - in_planes),
                            (0, cp - planes))).astype(jnp.bfloat16)
        bs = _pad1d(sb, cp).reshape(1, cp)
        out = se_residual_proj(out2, pooled, xs, wsc, bs, w1t, b1v, w2t, b2v)
    else:
        # Identity shortcut: bf16, true channel count; padded in-kernel if needed.
        sc = x.reshape(N, Ho * Wo, Cx)
        out = se_residual_identity(out2, pooled, sc, w1t, b1v, w2t, b2v)

    return out.reshape(N, Ho, Wo, cp)


def basic_block_forward(x_nchw, p, in_planes, planes, stride):
    """NCHW fp32 in/out wrapper around a single block (layout converted once)."""
    x = jnp.transpose(x_nchw, (0, 2, 3, 1)).astype(jnp.bfloat16)
    y = basic_block_nhwc(x, p, in_planes, planes, stride)
    y = y[..., :planes].astype(jnp.float32)
    return jnp.transpose(y, (0, 3, 1, 2))


# ----------------------------------------------------------------------------
# Synthetic parameters and pure-JAX fp32 reference
# ----------------------------------------------------------------------------
def make_params(key, in_planes, planes):
    ks = jax.random.split(key, 19)

    def rnd(k, shape, s=0.1):
        return jax.random.normal(k, shape, dtype=jnp.float32) * s

    return {
        "conv1_w": rnd(ks[0], (planes, in_planes, 3, 3), 0.05),
        "bn1_g": 1.0 + rnd(ks[1], (planes,)),
        "bn1_b": rnd(ks[2], (planes,)),
        "bn1_m": rnd(ks[3], (planes,)),
        "bn1_v": 0.5 + jax.random.uniform(ks[4], (planes,), dtype=jnp.float32),
        "conv2_w": rnd(ks[5], (planes, planes, 3, 3), 0.05),
        "bn2_g": 1.0 + rnd(ks[6], (planes,)),
        "bn2_b": rnd(ks[7], (planes,)),
        "bn2_m": rnd(ks[8], (planes,)),
        "bn2_v": 0.5 + jax.random.uniform(ks[9], (planes,), dtype=jnp.float32),
        "sc_conv_w": rnd(ks[10], (planes, in_planes, 1, 1), 0.05),
        "sc_bn_g": 1.0 + rnd(ks[11], (planes,)),
        "sc_bn_b": rnd(ks[12], (planes,)),
        "sc_bn_m": rnd(ks[13], (planes,)),
        "sc_bn_v": 0.5 + jax.random.uniform(ks[14], (planes,), dtype=jnp.float32),
        "fc1_w": rnd(ks[15], (planes // 16, planes, 1, 1)),
        "fc1_b": rnd(ks[16], (planes // 16,)),
        "fc2_w": rnd(ks[17], (planes, planes // 16, 1, 1)),
        "fc2_b": rnd(ks[18], (planes,)),
    }


def reference_forward(x, p, in_planes, planes, stride):
    def conv(v, w, s, pad):
        return jax.lax.conv_general_dilated(
            v, w, (s, s), ((pad, pad), (pad, pad)),
            dimension_numbers=("NCHW", "OIHW", "NCHW"),
            precision=jax.lax.Precision.HIGHEST)

    def bn(v, g, b, m, var):
        g, b, m, var = (t[None, :, None, None] for t in (g, b, m, var))
        return (v - m) / jnp.sqrt(var + BN_EPS) * g + b

    out = jax.nn.relu(bn(conv(x, p["conv1_w"], stride, 1),
                         p["bn1_g"], p["bn1_b"], p["bn1_m"], p["bn1_v"]))
    out = bn(conv(out, p["conv2_w"], 1, 1),
             p["bn2_g"], p["bn2_b"], p["bn2_m"], p["bn2_v"])
    w = jnp.mean(out, axis=(2, 3), keepdims=True)
    w = jax.nn.relu(conv(w, p["fc1_w"], 1, 0) + p["fc1_b"][None, :, None, None])
    w = jax.nn.sigmoid(conv(w, p["fc2_w"], 1, 0) + p["fc2_b"][None, :, None, None])
    out = out * w
    if stride != 1 or in_planes != planes:
        sc = bn(conv(x, p["sc_conv_w"], stride, 0),
                p["sc_bn_g"], p["sc_bn_b"], p["sc_bn_m"], p["sc_bn_v"])
    else:
        sc = x
    return jax.nn.relu(out + sc)


if __name__ == "__main__":
    key = jax.random.PRNGKey(0)
    N = 2

    # --- per-block checks: projection/stride-2 block and identity block -----
    for in_planes, planes, stride, hw in [(64, 128, 2, 16), (128, 128, 1, 8)]:
        kx, kp, key = jax.random.split(key, 3)
        x = jax.random.normal(kx, (N, in_planes, hw, hw), dtype=jnp.float32)
        params = make_params(kp, in_planes, planes)

        out = jax.block_until_ready(
            basic_block_forward(x, params, in_planes, planes, stride))
        ref = jax.block_until_ready(
            reference_forward(x, params, in_planes, planes, stride))

        assert out.shape == ref.shape == (N, planes, hw // stride, hw // stride)
        err = float(jnp.max(jnp.abs(out - ref)))
        # bf16 MXU inputs / bf16 activations vs fp32 HIGHEST reference
        assert jnp.allclose(out, ref, atol=5e-2, rtol=5e-2), err

    # --- chained blocks (one ResNet stage): stay in NHWC / padded-C / bf16 --
    kx, kpa, kpb, key = jax.random.split(key, 4)
    H = W = 16
    x = jax.random.normal(kx, (N, 64, H, W), dtype=jnp.float32)
    pa = make_params(kpa, 64, 128)
    pb = make_params(kpb, 128, 128)

    x_nhwc = jnp.transpose(x, (0, 2, 3, 1)).astype(jnp.bfloat16)
    y = basic_block_nhwc(x_nhwc, pa, 64, 128, 2)       # projection block
    y = basic_block_nhwc(y, pb, 128, 128, 1)           # identity block
    out = jnp.transpose(y[..., :128].astype(jnp.float32), (0, 3, 1, 2))
    out = jax.block_until_ready(out)

    ref = reference_forward(reference_forward(x, pa, 64, 128, 2),
                            pb, 128, 128, 1)
    ref = jax.block_until_ready(ref)

    assert out.shape == ref.shape == (N, 128, H // 2, W // 2)
    err = float(jnp.max(jnp.abs(out - ref)))
    # two chained bf16 blocks -> slightly looser tolerance
    assert jnp.allclose(out, ref, atol=1e-1, rtol=1e-1), err

    print("KERNEL_OK")
</pallas_src>

<mosaic_0001>
module attributes {stable_mosaic.version = 11 : i64} {
  func.func @_conv3x3_bn_kernel(%arg0: i32, %arg1: i32, %arg2: memref<4x9x9x64xbf16, #tpu.memory_space<vmem>>, %arg3: memref<576x128xbf16, #tpu.memory_space<vmem>>, %arg4: memref<1x128xf32, #tpu.memory_space<vmem>>, %arg5: memref<1x64x128xbf16, #tpu.memory_space<vmem>>, %arg6: memref<1x1x128xf32, #tpu.memory_space<vmem>>) attributes {dimension_semantics = [#tpu.dimension_semantics<parallel>, #tpu.dimension_semantics<parallel>], iteration_bounds = array<i64: 2, 1>, scalar_prefetch = 0 : i64, scratch_operands = 0 : i64, tpu.core_type = #tpu.core_type<tc>, window_params = [{transform_indices = @transform_0, window_bounds = array<i64: 4, 9, 9, 64>}, {transform_indices = @transform_1, window_bounds = array<i64: 576, 128>}, {transform_indices = @transform_2, window_bounds = array<i64: 1, 128>}, {transform_indices = @transform_3, window_bounds = array<i64: 1, 64, 128>}, {transform_indices = @transform_4, window_bounds = array<i64: 1, 1, 128>}]} {
    %cst = arith.constant 0.000000e+00 : f32
    %0 = vector.broadcast %cst : f32 to vector<64x128xf32>
    %c0 = arith.constant 0 : index
    %c0_0 = arith.constant 0 : index
    %c0_1 = arith.constant 0 : index
    %c0_2 = arith.constant 0 : index
    %1 = vector.load %arg2[%c0, %c0_0, %c0_1, %c0_2] : memref<4x9x9x64xbf16, #tpu.memory_space<vmem>>, vector<1x8x8x64xbf16>
    %2 = vector.shape_cast %1 : vector<1x8x8x64xbf16> to vector<8x8x64xbf16>
    %3 = vector.shape_cast %2 : vector<8x8x64xbf16> to vector<64x64xbf16>
    %c0_3 = arith.constant 0 : index
    %c0_4 = arith.constant 0 : index
    %4 = vector.load %arg3[%c0_3, %c0_4] : memref<576x128xbf16, #tpu.memory_space<vmem>>, vector<64x128xbf16>
    %cst_5 = arith.constant dense<0.000000e+00> : vector<64x128xf32>
    %5 = tpu.matmul %3, %4, %cst_5 {dimension_numbers = #tpu.dot_dimension_numbers<[1], [0], [0], [1], [0, 0, 1, 1], [], []>} : vector<64x64xbf16>, vector<64x128xbf16>, vector<64x128xf32> -> vector<64x128xf32>
    %6 = arith.addf %0, %5 : vector<64x128xf32>
    %c1 = arith.constant 1 : index
    %c0_6 = arith.constant 0 : index
    %c0_7 = arith.constant 0 : index
    %c0_8 = arith.constant 0 : index
    %7 = vector.load %arg2[%c1, %c0_6, %c0_7, %c0_8] : memref<4x9x9x64xbf16, #tpu.memory_space<vmem>>, vector<1x8x8x64xbf16>
    %8 = vector.shape_cast %7 : vector<1x8x8x64xbf16> to vector<8x8x64xbf16>
    %9 = vector.shape_cast %8 : vector<8x8x64xbf16> to vector<64x64xbf16>
    %c64 = arith.constant 64 : index
    %c0_9 = arith.constant 0 : index
    %10 = vector.load %arg3[%c64, %c0_9] : memref<576x128xbf16, #tpu.memory_space<vmem>>, vector<64x128xbf16>
    %cst_10 = arith.constant dense<0.000000e+00> : vector<64x128xf32>
    %11 = tpu.matmul %9, %10, %cst_10 {dimension_numbers = #tpu.dot_dimension_numbers<[1], [0], [0], [1], [0, 0, 1, 1], [], []>} : vector<64x64xbf16>, vector<64x128xbf16>, vector<64x128xf32> -> vector<64x128xf32>
    %12 = arith.addf %6, %11 : vector<64x128xf32>
    %c0_11 = arith.constant 0 : index
    %c0_12 = arith.constant 0 : index
    %c1_13 = arith.constant 1 : index
    %c0_14 = arith.constant 0 : index
    %13 = vector.load %arg2[%c0_11, %c0_12, %c1_13, %c0_14] : memref<4x9x9x64xbf16, #tpu.memory_space<vmem>>, vector<1x8x8x64xbf16>
    %14 = vector.shape_cast %13 : vector<1x8x8x64xbf16> to vector<8x8x64xbf16>
    %15 = vector.shape_cast %14 : vector<8x8x64xbf16> to vector<64x64xbf16>
    %c128 = arith.constant 128 : index
    %c0_15 = arith.constant 0 : index
    %16 = vector.load %arg3[%c128, %c0_15] : memref<576x128xbf16, #tpu.memory_space<vmem>>, vector<64x128xbf16>
    %cst_16 = arith.constant dense<0.000000e+00> : vector<64x128xf32>
    %17 = tpu.matmul %15, %16, %cst_16 {dimension_numbers = #tpu.dot_dimension_numbers<[1], [0], [0], [1], [0, 0, 1, 1], [], []>} : vector<64x64xbf16>, vector<64x128xbf16>, vector<64x128xf32> -> vector<64x128xf32>
    %18 = arith.addf %12, %17 : vector<64x128xf32>
    %c2 = arith.constant 2 : index
    %c0_17 = arith.constant 0 : index
    %c0_18 = arith.constant 0 : index
    %c0_19 = arith.constant 0 : index
    %19 = vector.load %arg2[%c2, %c0_17, %c0_18, %c0_19] : memref<4x9x9x64xbf16, #tpu.memory_space<vmem>>, vector<1x8x8x64xbf16>
    %20 = vector.shape_cast %19 : vector<1x8x8x64xbf16> to vector<8x8x64xbf16>
    %21 = vector.shape_cast %20 : vector<8x8x64xbf16> to vector<64x64xbf16>
    %c192 = arith.constant 192 : index
    %c0_20 = arith.constant 0 : index
    %22 = vector.load %arg3[%c192, %c0_20] : memref<576x128xbf16, #tpu.memory_space<vmem>>, vector<64x128xbf16>
    %cst_21 = arith.constant dense<0.000000e+00> : vector<64x128xf32>
    %23 = tpu.matmul %21, %22, %cst_21 {dimension_numbers = #tpu.dot_dimension_numbers<[1], [0], [0], [1], [0, 0, 1, 1], [], []>} : vector<64x64xbf16>, vector<64x128xbf16>, vector<64x128xf32> -> vector<64x128xf32>
    %24 = arith.addf %18, %23 : vector<64x128xf32>
    %c3 = arith.constant 3 : index
    %c0_22 = arith.constant 0 : index
    %c0_23 = arith.constant 0 : index
    %c0_24 = arith.constant 0 : index
    %25 = vector.load %arg2[%c3, %c0_22, %c0_23, %c0_24] : memref<4x9x9x64xbf16, #tpu.memory_space<vmem>>, vector<1x8x8x64xbf16>
    %26 = vector.shape_cast %25 : vector<1x8x8x64xbf16> to vector<8x8x64xbf16>
    %27 = vector.shape_cast %26 : vector<8x8x64xbf16> to vector<64x64xbf16>
    %c256 = arith.constant 256 : index
    %c0_25 = arith.constant 0 : index
    %28 = vector.load %arg3[%c256, %c0_25] : memref<576x128xbf16, #tpu.memory_space<vmem>>, vector<64x128xbf16>
    %cst_26 = arith.constant dense<0.000000e+00> : vector<64x128xf32>
    %29 = tpu.matmul %27, %28, %cst_26 {dimension_numbers = #tpu.dot_dimension_numbers<[1], [0], [0], [1], [0, 0, 1, 1], [], []>} : vector<64x64xbf16>, vector<64x128xbf16>, vector<64x128xf32> -> vector<64x128xf32>
    %30 = arith.addf %24, %29 : vector<64x128xf32>
    %c2_27 = arith.constant 2 : index
    %c0_28 = arith.constant 0 : index
    %c1_29 = arith.constant 1 : index
    %c0_30 = arith.constant 0 : index
    %31 = vector.load %arg2[%c2_27, %c0_28, %c1_29, %c0_30] : memref<4x9x9x64xbf16, #tpu.memory_space<vmem>>, vector<1x8x8x64xbf16>
    %32 = vector.shape_cast %31 : vector<1x8x8x64xbf16> to vector<8x8x64xbf16>
    %33 = vector.shape_cast %32 : vector<8x8x64xbf16> to vector<64x64xbf16>
    %c320 = arith.constant 320 : index
    %c0_31 = arith.constant 0 : index
    %34 = vector.load %arg3[%c320, %c0_31] : memref<576x128xbf16, #tpu.memory_space<vmem>>, vector<64x128xbf16>
    %cst_32 = arith.constant dense<0.000000e+00> : vector<64x128xf32>
    %35 = tpu.matmul %33, %34, %cst_32 {dimension_numbers = #tpu.dot_dimension_numbers<[1], [0], [0], [1], [0, 0, 1, 1], [], []>} : vector<64x64xbf16>, vector<64x128xbf16>, vector<64x128xf32> -> vector<64x128xf32>
    %36 = arith.addf %30, %35 : vector<64x128xf32>
    %c0_33 = arith.constant 0 : index
    %c1_34 = arith.constant 1 : index
    %c0_35 = arith.constant 0 : index
    %c0_36 = arith.constant 0 : index
    %37 = vector.load %arg2[%c0_33, %c1_34, %c0_35, %c0_36] : memref<4x9x9x64xbf16, #tpu.memory_space<vmem>>, vector<1x8x8x64xbf16>
    %38 = vector.shape_cast %37 : vector<1x8x8x64xbf16> to vector<8x8x64xbf16>
    %39 = vector.shape_cast %38 : vector<8x8x64xbf16> to vector<64x64xbf16>
    %c384 = arith.constant 384 : index
    %c0_37 = arith.constant 0 : index
    %40 = vector.load %arg3[%c384, %c0_37] : memref<576x128xbf16, #tpu.memory_space<vmem>>, vector<64x128xbf16>
    %cst_38 = arith.constant dense<0.000000e+00> : vector<64x128xf32>
    %41 = tpu.matmul %39, %40, %cst_38 {dimension_numbers = #tpu.dot_dimension_numbers<[1], [0], [0], [1], [0, 0, 1, 1], [], []>} : vector<64x64xbf16>, vector<64x128xbf16>, vector<64x128xf32> -> vector<64x128xf32>
    %42 = arith.addf %36, %41 : vector<64x128xf32>
    %c1_39 = arith.constant 1 : index
    %c1_40 = arith.constant 1 : index
    %c0_41 = arith.constant 0 : index
    %c0_42 = arith.constant 0 : index
    %43 = vector.load %arg2[%c1_39, %c1_40, %c0_41, %c0_42] : memref<4x9x9x64xbf16, #tpu.memory_space<vmem>>, vector<1x8x8x64xbf16>
    %44 = vector.shape_cast %43 : vector<1x8x8x64xbf16> to vector<8x8x64xbf16>
    %45 = vector.shape_cast %44 : vector<8x8x64xbf16> to vector<64x64xbf16>
    %c448 = arith.constant 448 : index
    %c0_43 = arith.constant 0 : index
    %46 = vector.load %arg3[%c448, %c0_43] : memref<576x128xbf16, #tpu.memory_space<vmem>>, vector<64x128xbf16>
    %cst_44 = arith.constant dense<0.000000e+00> : vector<64x128xf32>
    %47 = tpu.matmul %45, %46, %cst_44 {dimension_numbers = #tpu.dot_dimension_numbers<[1], [0], [0], [1], [0, 0, 1, 1], [], []>} : vector<64x64xbf16>, vector<64x128xbf16>, vector<64x128xf32> -> vector<64x128xf32>
    %48 = arith.addf %42, %47 : vector<64x128xf32>
    %c0_45 = arith.constant 0 : index
    %c1_46 = arith.constant 1 : index
    %c1_47 = arith.constant 1 : index
    %c0_48 = arith.constant 0 : index
    %49 = vector.load %arg2[%c0_45, %c1_46, %c1_47, %c0_48] : memref<4x9x9x64xbf16, #tpu.memory_space<vmem>>, vector<1x8x8x64xbf16>
    %50 = vector.shape_cast %49 : vector<1x8x8x64xbf16> to vector<8x8x64xbf16>
    %51 = vector.shape_cast %50 : vector<8x8x64xbf16> to vector<64x64xbf16>
    %c512 = arith.constant 512 : index
    %c0_49 = arith.constant 0 : index
    %52 = vector.load %arg3[%c512, %c0_49] : memref<576x128xbf16, #tpu.memory_space<vmem>>, vector<64x128xbf16>
    %cst_50 = arith.constant dense<0.000000e+00> : vector<64x128xf32>
    %53 = tpu.matmul %51, %52, %cst_50 {dimension_numbers = #tpu.dot_dimension_numbers<[1], [0], [0], [1], [0, 0, 1, 1], [], []>} : vector<64x64xbf16>, vector<64x128xbf16>, vector<64x128xf32> -> vector<64x128xf32>
    %54 = arith.addf %48, %53 : vector<64x128xf32>
    %c0_51 = arith.constant 0 : index
    %c0_52 = arith.constant 0 : index
    %55 = vector.load %arg4[%c0_51, %c0_52] : memref<1x128xf32, #tpu.memory_space<vmem>>, vector<1x128xf32>
    %56 = vector.broadcast %55 : vector<1x128xf32> to vector<64x128xf32>
    %57 = arith.addf %54, %56 : vector<64x128xf32>
    %cst_53 = arith.constant dense<0.000000e+00> : vector<128xf32>
    %58 = vector.multi_reduction <add>, %57, %cst_53 [0] : vector<64x128xf32> to vector<128xf32>
    %59 = vector.shape_cast %58 : vector<128xf32> to vector<1x128xf32>
    %cst_54 = arith.constant 1.562500e-02 : f32
    %60 = vector.broadcast %cst_54 : f32 to vector<1x128xf32>
    %61 = arith.mulf %59, %60 : vector<1x128xf32>
    %c0_55 = arith.constant 0 : index
    %c0_56 = arith.constant 0 : index
    %c0_57 = arith.constant 0 : index
    %62 = vector.load %arg6[%c0_55, %c0_56, %c0_57] : memref<1x1x128xf32, #tpu.memory_space<vmem>>, vector<1x1x128xf32>
    %63 = vector.shape_cast %62 : vector<1x1x128xf32> to vector<1x128xf32>
    %64 = vector.shape_cast %61 : vector<1x128xf32> to vector<1x1x128xf32>
    tpu.vector_store %arg6[%c0_55, %c0_56, %c0_57], %64 {strides = array<i32>} : memref<1x1x128xf32, #tpu.memory_space<vmem>>, vector<1x1x128xf32>,
    %cst_58 = arith.constant 0.000000e+00 : f32
    %65 = vector.broadcast %cst_58 : f32 to vector<64x128xf32>
    %66 = arith.maximumf %57, %65 : vector<64x128xf32>
    %67 = arith.truncf %66 : vector<64x128xf32> to vector<64x128xbf16>
    %c0_59 = arith.constant 0 : index
    %c0_60 = arith.constant 0 : index
    %c0_61 = arith.constant 0 : index
    %68 = vector.load %arg5[%c0_59, %c0_60, %c0_61] : memref<1x64x128xbf16, #tpu.memory_space<vmem>>, vector<1x64x128xbf16>
    %69 = vector.shape_cast %68 : vector<1x64x128xbf16> to vector<64x128xbf16>
    %70 = vector.shape_cast %67 : vector<64x128xbf16> to vector<1x64x128xbf16>
    tpu.vector_store %arg5[%c0_59, %c0_60, %c0_61], %70 {strides = array<i32>} : memref<1x64x128xbf16, #tpu.memory_space<vmem>>, vector<1x64x128xbf16>,
    return
  }
  func.func @transform_0(%arg0: i32, %arg1: i32) -> (i32, i32, i32, i32) {
    %c0_i32 = arith.constant 0 : i32
    %c0_i32_0 = arith.constant 0 : i32
    %c0_i32_1 = arith.constant 0 : i32
    %c0_i32_2 = arith.constant 0 : i32
    return %arg0, %c0_i32, %c0_i32_0, %c0_i32_1 : i32, i32, i32, i32
  }
  func.func @transform_1(%arg0: i32, %arg1: i32) -> (i32, i32) {
    %c0_i32 = arith.constant 0 : i32
    %c0_i32_0 = arith.constant 0 : i32
    return %c0_i32, %arg1 : i32, i32
  }
  func.func @transform_2(%arg0: i32, %arg1: i32) -> (i32, i32) {
    %c0_i32 = arith.constant 0 : i32
    %c0_i32_0 = arith.constant 0 : i32
    return %c0_i32, %arg1 : i32, i32
  }
  func.func @transform_3(%arg0: i32, %arg1: i32) -> (i32, i32, i32) {
    %c0_i32 = arith.constant 0 : i32
    %c0_i32_0 = arith.constant 0 : i32
    return %arg0, %c0_i32, %arg1 : i32, i32, i32
  }
  func.func @transform_4(%arg0: i32, %arg1: i32) -> (i32, i32, i32) {
    %c0_i32 = arith.constant 0 : i32
    %c0_i32_0 = arith.constant 0 : i32
    return %arg0, %c0_i32, %arg1 : i32, i32, i32
  }
}

</mosaic_0001>

<llo_original>
// kernel: tpu_custom_call.1
$region0: #{tpu_custom_call.1}
  #allocation0 [shape = 'u32[]', space=smem, size = 0x4, offset = 0x4, fixed_abs, tag = 'smem constant byte address 0x4 - core index']
  #allocation1 [shape = 'u32[144,128]{1,0:T(1,128)}', space=vmem, size = 0x12000, scoped, tag = 'internal scratch']
  %s0 = inlined_call_operand.vmem [shape: bf16[8,9,9,64], index: 0, kind: input, shape index: {}]
  %s1 = inlined_call_operand.vmem [shape: bf16[576,128], index: 1, kind: input, shape index: {}]
  %s2 = inlined_call_operand.vmem [shape: f32[1,128], index: 2, kind: input, shape index: {}]
  %s3 = inlined_call_operand.hbm [shape: bf16[2,64,128], index: 3, kind: output, shape index: {0}]
  %s4 = inlined_call_operand.hbm [shape: f32[2,1,128], index: 4, kind: output, shape index: {1}]
  %5 = xla_tuple %s3, %s4
  %s6 = sld [smem:[#allocation0]]
  $region53: #{tpu_custom_call.1} parent=0
    _
  %s8 = ssub.s32 1, %s6
  %s9 = scalar_select 0, %s8, %s6
  $region1: #{tpu_custom_call.1} parent=0
    #allocation2 [shape = 'u8[32768]{0}', space=vmem, size = 0x8000, scoped, tag = 'output window, operand 0']
    #allocation3 [shape = 's32[2]{0}', space=sflag, size = 0x8, scoped, tag = 'scoped memory for tpu_custom_call.1']
    #allocation4 [shape = 'u8[1024]{0}', space=vmem, size = 0x400, scoped, tag = 'output window, operand 1']
    #allocation5 [shape = 's32[2]{0}', space=sflag, size = 0x8, scoped, tag = 'scoped memory for tpu_custom_call.1']
    %10 = vsyncpa [#allocation3], 0
    %s11 = scalar_lea.sflag [#allocation3], 1
    %12 = vsyncpa %s11, 0
    %13 = vsyncpa [#allocation5], 0
    %s14 = scalar_lea.sflag [#allocation5], 1
    %15 = vsyncpa %s14, 0
    loop: start=0, step=1, limit=4
    $region2: #{tpu_custom_call.1} parent=1 // loop_pre_header
      _
    $region3: #{tpu_custom_call.1} parent=1 // loop_header
      %s17 = sphi 0, %s21
      %p18 = scmp.ge.s32.totalorder %s17, 4
      %s24 = sphi 0, %s36
      %s25 = sphi 0, %s32
      %s26 = sphi 0, %s24
      %s27 = sphi 0, %s25
      %s28 = sphi 0, %s26
      %s29 = sphi 0, %s27
      %s39 = sphi 0, %s41
      %s42 = sphi 0, %s39
      %s43 = sphi 0, %s42
      %s59 = sphi 0, %s43
      %s65 = sphi 0, %s67
      %s68 = sphi 0, %s65
      %s69 = sphi 0, %s68
      %s85 = sphi 0, %s69
      %s91 = sphi 0, %s93
      %s94 = sphi 0, %s91
      %s95 = sphi 0, %s94
      %s111 = sphi 0, %s95
      %s119 = sphi 0, %s121
      %s122 = sphi 0, %s119
      %s123 = sphi 0, %s122
      %s139 = sphi 0, %s123
      %s147 = sphi 0, %s149
      %s150 = sphi 0, %s147
      %s151 = sphi 0, %s150
      %s167 = sphi 0, %s151
    $region4: #{tpu_custom_call.1} parent=1 // loop_header_branch
      %20 = sbr.rel (%p18) target = $region8
    $region5: #{tpu_custom_call.1} parent=1 // loop_body
      %s22 = ssub.s32 %s17, 1
      %s23 = ssub.s32 %s17, 2
      %s30 = sadd.s32 1, %s25
      %p31 = scmp.ge.s32.totalorder %s30, 1
      %s32 = scalar_select %p31, 0, %s30
      %s33 = sadd.s32 1, %s24
      %s34 = scalar_select %p31, %s33, %s24
      %p35 = scmp.ge.s32.totalorder %s34, 2
      %s36 = scalar_select %p35, 0, %s34
      %s37 = ssub.s32 %s24, %s36
      %p38 = scmp.eq.s32.totalorder %s37, 0
      %s40 = sadd.s32 %s39, 1
      %s41 = scalar_select %p38, %s39, %s40
      %p44 = pneg %p38
      %p45 = scmp.eq.s32.totalorder %s17, 1
      %p46 = por %p44, %p45
      %p47 = scmp.ne.s32.totalorder %s39, %s42
      %p48 = scmp.eq.s32.totalorder %s17, 0
      %p49 = por %p47, %p48
      %p50 = scmp.ne.s32.totalorder %s39, %s42
      %p51 = scmp.eq.s32.totalorder %s22, 1
      %p52 = por %p50, %p51
      %p53 = scmp.ne.s32.totalorder %s42, %s43
      %p54 = scmp.eq.s32.totalorder %s22, 0
      %p55 = por %p53, %p54
      %p56 = scmp.ne.s32.totalorder %s42, %s43
      %p57 = scmp.eq.s32.totalorder %s23, 1
      %p58 = por %p56, %p57
      %p60 = scmp.ne.s32.totalorder %s43, %s59
      %p61 = scmp.eq.s32.totalorder %s23, 0
      %p62 = por %p60, %p61
      %s63 = ssub.s32 %s25, %s32
      %p64 = scmp.eq.s32.totalorder %s63, 0
      %s66 = sadd.s32 %s65, 1
      %s67 = scalar_select %p64, %s65, %s66
      %p70 = pneg %p64
      %p71 = scmp.eq.s32.totalorder %s17, 1
      %p72 = por %p70, %p71
      %p73 = scmp.ne.s32.totalorder %s65, %s68
      %p74 = scmp.eq.s32.totalorder %s17, 0
      %p75 = por %p73, %p74
      %p76 = scmp.ne.s32.totalorder %s65, %s68
      %p77 = scmp.eq.s32.totalorder %s22, 1
      %p78 = por %p76, %p77
      %p79 = scmp.ne.s32.totalorder %s68, %s69
      %p80 = scmp.eq.s32.totalorder %s22, 0
      %p81 = por %p79, %p80
      %p82 = scmp.ne.s32.totalorder %s68, %s69
      %p83 = scmp.eq.s32.totalorder %s23, 1
      %p84 = por %p82, %p83
      %p86 = scmp.ne.s32.totalorder %s69, %s85
      %p87 = scmp.eq.s32.totalorder %s23, 0
      %p88 = por %p86, %p87
      %s89 = ssub.s32 %s25, %s32
      %p90 = scmp.eq.s32.totalorder %s89, 0
      %s92 = sadd.s32 %s91, 1
      %s93 = scalar_select %p90, %s91, %s92
      %p96 = pneg %p90
      %p97 = scmp.eq.s32.totalorder %s17, 1
      %p98 = por %p96, %p97
      %p99 = scmp.ne.s32.totalorder %s91, %s94
      %p100 = scmp.eq.s32.totalorder %s17, 0
      %p101 = por %p99, %p100
      %p102 = scmp.ne.s32.totalorder %s91, %s94
      %p103 = scmp.eq.s32.totalorder %s22, 1
      %p104 = por %p102, %p103
      %p105 = scmp.ne.s32.totalorder %s94, %s95
      %p106 = scmp.eq.s32.totalorder %s22, 0
      %p107 = por %p105, %p106
      %p108 = scmp.ne.s32.totalorder %s94, %s95
      %p109 = scmp.eq.s32.totalorder %s23, 1
      %p110 = por %p108, %p109
      %p112 = scmp.ne.s32.totalorder %s95, %s111
      %p113 = scmp.eq.s32.totalorder %s23, 0
      %p114 = por %p112, %p113
      %s115 = ssub.s32 %s24, %s36
      %s116 = ssub.s32 %s25, %s32
      %s117 = sor.u32 %s115, %s116
      %p118 = scmp.eq.s32.totalorder %s117, 0
      %s120 = sadd.s32 %s119, 1
      %s121 = scalar_select %p118, %s119, %s120
      %p124 = pneg %p118
      %p125 = scmp.eq.s32.totalorder %s17, 1
      %p126 = por %p124, %p125
      %p127 = scmp.ne.s32.totalorder %s119, %s122
      %p128 = scmp.eq.s32.totalorder %s17, 0
      %p129 = por %p127, %p128
      %p130 = scmp.ne.s32.totalorder %s119, %s122
      %p131 = scmp.eq.s32.totalorder %s22, 1
      %p132 = por %p130, %p131
      %p133 = scmp.ne.s32.totalorder %s122, %s123
      %p134 = scmp.eq.s32.totalorder %s22, 0
      %p135 = por %p133, %p134
      %p136 = scmp.ne.s32.totalorder %s122, %s123
      %p137 = scmp.eq.s32.totalorder %s23, 1
      %p138 = por %p136, %p137
      %p140 = scmp.ne.s32.totalorder %s123, %s139
      %p141 = scmp.eq.s32.totalorder %s23, 0
      %p142 = por %p140, %p141
      %s143 = ssub.s32 %s24, %s36
      %s144 = ssub.s32 %s25, %s32
      %s145 = sor.u32 %s143, %s144
      %p146 = scmp.eq.s32.totalorder %s145, 0
      %s148 = sadd.s32 %s147, 1
      %s149 = scalar_select %p146, %s147, %s148
      %p152 = pneg %p146
      %p153 = scmp.eq.s32.totalorder %s17, 1
      %p154 = por %p152, %p153
      %p155 = scmp.ne.s32.totalorder %s147, %s150
      %p156 = scmp.eq.s32.totalorder %s17, 0
      %p157 = por %p155, %p156
      %p158 = scmp.ne.s32.totalorder %s147, %s150
      %p159 = scmp.eq.s32.totalorder %s22, 1
      %p160 = por %p158, %p159
      %p161 = scmp.ne.s32.totalorder %s150, %s151
      %p162 = scmp.eq.s32.totalorder %s22, 0
      %p163 = por %p161, %p162
      %p164 = scmp.ne.s32.totalorder %s150, %s151
      %p165 = scmp.eq.s32.totalorder %s23, 1
      %p166 = por %p164, %p165
      %p168 = scmp.ne.s32.totalorder %s151, %s167
      %p169 = scmp.eq.s32.totalorder %s23, 0
      %p170 = por %p168, %p169
      %p171 = scmp.le.s32.totalorder 1, %s17
      %p172 = scmp.lt.s32.totalorder %s17, 3
      %p173 = pnand %p171, %p172
      %p174 = pneg %p173
      // Predicated region
      $region9: #{tpu_custom_call.1} parent=5 // pred_check
        _
      $region10: #{tpu_custom_call.1} parent=5 // pred_check_branch
        %176 = sbr.rel (%p173) target = $region12
      $region11: #{tpu_custom_call.1} parent=5 // pred_region
        %s177 = ssub.s32 %s17, 1
        // Predicated region
        $region13: #{tpu_custom_call.1} parent=11 // pred_check
          %p178 = pneg %p81
        $region14: #{tpu_custom_call.1} parent=11 // pred_check_branch
          %180 = sbr.rel (%p178) target = $region16
        $region15: #{tpu_custom_call.1} parent=11 // pred_region
          %p181 = scmp.lt.s32.totalorder %s27, 0
          %s182 = scalar_select %p181, %s27, 0
          %s183 = smul.addr %s182, 4
          %s184 = scalar_lea.vmem %s1, %s183
        $region16: #{tpu_custom_call.1} parent=11 // pred_fallthru
          _
        // Predicated region
        $region17: #{tpu_custom_call.1} parent=11 // pred_check
          %p185 = pneg %p107
        $region18: #{tpu_custom_call.1} parent=11 // pred_check_branch
          %187 = sbr.rel (%p185) target = $region20
        $region19: #{tpu_custom_call.1} parent=11 // pred_region
          %p188 = scmp.lt.s32.totalorder %s27, 0
          %s189 = scalar_select %p188, %s27, 0
          %s190 = scalar_lea.vmem %s2, %s189
        $region20: #{tpu_custom_call.1} parent=11 // pred_fallthru
          _
      $region12: #{tpu_custom_call.1} parent=5 // pred_fallthru
        _
      %p191 = scmp.lt.s32.totalorder %s17, 2
      // Predicated region
      $region21: #{tpu_custom_call.1} parent=5 // pred_check
        %p192 = pneg %p191
      $region22: #{tpu_custom_call.1} parent=5 // pred_check_branch
        %194 = sbr.rel (%p192) target = $region24
      $region23: #{tpu_custom_call.1} parent=5 // pred_region
        // Predicated region
        $region25: #{tpu_custom_call.1} parent=23 // pred_check
          %p195 = pneg %p49
        $region26: #{tpu_custom_call.1} parent=23 // pred_check_branch
          %197 = sbr.rel (%p195) target = $region28
        $region27: #{tpu_custom_call.1} parent=23 // pred_region
          %s198 = smul.u32 4, %s24
          %p199 = scmp.lt.s32.totalorder %s198, 7
          %s200 = scalar_select %p199, %s198, 7
          %s201 = smul.addr %s200, 18
          %s202 = smul.addr %s201, 4
          %s203 = scalar_lea.vmem %s0, %s202
          %s204 = smul.u32 4, %s24
        $region28: #{tpu_custom_call.1} parent=23 // pred_fallthru
          _
      $region24: #{tpu_custom_call.1} parent=5 // pred_fallthru
        _
      %p205 = scmp.le.s32.totalorder 1, %s17
      %p206 = scmp.lt.s32.totalorder %s17, 3
      %p207 = pnand %p205, %p206
      %p208 = pneg %p207
      // Predicated region
      $region29: #{tpu_custom_call.1} parent=5 // pred_check
        _
      $region30: #{tpu_custom_call.1} parent=5 // pred_check_branch
        %210 = sbr.rel (%p207) target = $region32
      $region31: #{tpu_custom_call.1} parent=5 // pred_region
        %s211 = ssub.s32 %s17, 1
        %s212 = smul.u32 4, %s26
        %p213 = scmp.lt.s32.totalorder %s212, 7
        %s214 = scalar_select %p213, %s212, 7
        %s215 = smul.addr %s214, 18
        %s216 = smul.addr %s215, 4
        %s217 = scalar_lea.vmem %s0, %s216
        %p218 = pneg %p55
        %p219 = pneg %p52
        %p220 = scmp.lt.s32.totalorder %s27, 0
        %s221 = scalar_select %p220, %s27, 0
        %s222 = smul.addr %s221, 4
        %s223 = scalar_lea.vmem %s1, %s222
        %p224 = pneg %p81
        %p225 = pneg %p78
        %p226 = scmp.lt.s32.totalorder %s27, 0
        %s227 = scalar_select %p226, %s27, 0
        %s228 = scalar_lea.vmem %s2, %s227
        %p229 = pneg %p107
        %p230 = pneg %p104
        %p231 = pneg %p135
        %p232 = pneg %p132
        %s233 = sand.u32 %s122, 1
        %s234 = scalar_lea.sflag [#allocation3], %s233
        %s235 = sand.u32 %s122, 1
        %s236 = smul.addr %s235, 32
        %s237 = scalar_lea.vmem [#allocation2], %s236
        %p238 = pneg %p163
        %p239 = pneg %p160
        %s240 = sand.u32 %s150, 1
        %s241 = scalar_lea.sflag [#allocation5], %s240
        %s242 = sand.u32 %s150, 1
        %s243 = scalar_lea.vmem [#allocation4], %s242
        %s244 = smul.u32 4, %s26
        %p245 = scmp.lt.s32.totalorder %s244, 7
        %s246 = scalar_select %p245, %s244, 7
        %s247 = smul.addr %s246, 18
        %s248 = smul.addr %s247, 4
        %s249 = scalar_lea.vmem %s0, %s248
        %s250 = smul.u32 4, %s26
        %p251 = scmp.lt.s32.totalorder %s27, 0
        %s252 = scalar_select %p251, %s27, 0
        %s253 = smul.addr %s252, 4
        %s254 = scalar_lea.vmem %s1, %s253
        %p255 = scmp.lt.s32.totalorder %s27, 0
        %s256 = scalar_select %p255, %s27, 0
        %s257 = scalar_lea.vmem %s2, %s256
        %v259 = vld [vmem:[%s249] sm:$0xf]
        %v260 = vld [vmem:[%s249 + $0x8] sm:$0xf]
        %v261 = vld [vmem:[%s249 + $0x10] sm:$0xf]
        %v262 = vld [vmem:[%s249 + $0x18] sm:$0xf]
        %v263 = vld [vmem:[%s249 + $0x20] sm:$0xf]
        %v264 = vld [vmem:[%s249 + $0x28] sm:$0xf]
        %v265 = vld [vmem:[%s249 + $0x30] sm:$0xf]
        %v266 = vld [vmem:[%s249 + $0x38] sm:$0xf]
        %v267 = vld [vmem:[%s254] sm:$0xf]
        %v268 = vld [vmem:[%s254 + $0x4] sm:$0xf]
        %v269 = vld [vmem:[%s254 + $0x8] sm:$0xf]
        %v270 = vld [vmem:[%s254 + $0xc] sm:$0xf]
        %v271 = vld [vmem:[%s254 + $0x10] sm:$0xf]
        %v272 = vld [vmem:[%s254 + $0x14] sm:$0xf]
        %v273 = vld [vmem:[%s254 + $0x18] sm:$0xf]
        %v274 = vld [vmem:[%s254 + $0x1c] sm:$0xf]
        %s275 = scalar_lea.vmem %s249, 72
        %v276 = vld [vmem:[%s275] sm:$0xf]
        %v277 = vld [vmem:[%s275 + $0x8] sm:$0xf]
        %v278 = vld [vmem:[%s275 + $0x10] sm:$0xf]
        %v279 = vld [vmem:[%s275 + $0x18] sm:$0xf]
        %v280 = vld [vmem:[%s275 + $0x20] sm:$0xf]
        %v281 = vld [vmem:[%s275 + $0x28] sm:$0xf]
        %v282 = vld [vmem:[%s275 + $0x30] sm:$0xf]
        %v283 = vld [vmem:[%s275 + $0x38] sm:$0xf]
        %v284 = vld [vmem:[%s254 + $0x20] sm:$0xf]
        %v285 = vld [vmem:[%s254 + $0x24] sm:$0xf]
        %v286 = vld [vmem:[%s254 + $0x28] sm:$0xf]
        %v287 = vld [vmem:[%s254 + $0x2c] sm:$0xf]
        %v288 = vld [vmem:[%s254 + $0x30] sm:$0xf]
        %v289 = vld [vmem:[%s254 + $0x34] sm:$0xf]
        %v290 = vld [vmem:[%s254 + $0x38] sm:$0xf]
        %v291 = vld [vmem:[%s254 + $0x3c] sm:$0xf]
        %v300 = vunpack.c.l.b16 %v276
        %v301 = vunpack.c.l.b16 %v277
        %v302 = vunpack.c.l.b16 %v278
        %v303 = vunpack.c.l.b16 %v279
        %v304 = vunpack.c.l.b16 %v280
        %v305 = vunpack.c.l.b16 %v281
        %v306 = vunpack.c.l.b16 %v282
        %v307 = vunpack.c.l.b16 %v283
        %v308 = vpack.c.b16 %v301, %v300
        %v309 = vpack.c.b16 %v303, %v302
        %v310 = vpack.c.b16 %v305, %v304
        %v311 = vpack.c.b16 %v307, %v306
        %v320 = vunpack.c.l.b16 %v284
        %v321 = vunpack.c.l.b16 %v285
        %v322 = vunpack.c.l.b16 %v286
        %v323 = vunpack.c.l.b16 %v287
        %v324 = vunpack.c.l.b16 %v288
        %v325 = vunpack.c.l.b16 %v289
        %v326 = vunpack.c.l.b16 %v290
        %v327 = vunpack.c.l.b16 %v291
        %v328 = vpack.c.b16 %v321, %v320
        %v329 = vpack.c.b16 %v323, %v322
        %v330 = vpack.c.b16 %v325, %v324
        %v331 = vpack.c.b16 %v327, %v326
        %vm336 = vcmask 523264
        %v338 = vsel %vm336, %v308, 0
        %v341 = vsel %vm336, %v309, 0
        %v344 = vsel %vm336, %v310, 0
        %v347 = vsel %vm336, %v311, 0
        %349 = vmatprep.subr.bf16.mxu0 0
        %350 = vmatpush1.bf16.msra.mxu0 %v328
        %351 = vmatprep.subr.bf16.mxu0 0
        %352 = vmatpush1.bf16.msra.mxu0 %v329
        %353 = vmatprep.subr.bf16.mxu0 0
        %354 = vmatpush1.bf16.msra.mxu0 %v330
        %355 = vmatprep.subr.bf16.mxu0 0
        %356 = vmatpush1.bf16.msra.mxu0 %v331
        %357 = vmatprep.subr.bf16.mxu0 0
        %358 = vmatpush1.bf16.msra.mxu0 0
        %359 = vmatprep.subr.bf16.mxu0 0
        %360 = vmatpush1.bf16.msra.mxu0 0
        %361 = vmatprep.subr.bf16.mxu0 0
        %362 = vmatpush1.bf16.msra.mxu0 0
        %363 = vmatprep.subr.bf16.mxu0 0
        %364 = vmatpush1.bf16.msra.mxu0 0
        %365 = vmatprep.subr.bf16.mxu0 0
        %366 = vmatpush1.bf16.msra.mxu0 0
        %367 = vmatprep.subr.bf16.mxu0 0
        %368 = vmatpush1.bf16.msra.mxu0 0
        %369 = vmatprep.subr.bf16.mxu0 0
        %370 = vmatpush1.bf16.msra.mxu0 0
        %371 = vmatprep.subr.bf16.mxu0 0
        %372 = vmatpush1.bf16.msra.mxu0 0
        %373 = vmatprep.subr.bf16.mxu0 0
        %374 = vmatpush1.bf16.msra.mxu0 0
        %375 = vmatprep.subr.bf16.mxu0 0
        %376 = vmatpush1.bf16.msra.mxu0 0
        %377 = vmatprep.subr.bf16.mxu0 0
        %378 = vmatpush1.bf16.msra.mxu0 0
        %379 = vmatprep.subr.bf16.mxu0 0
        %380 = vmatpush1.bf16.msra.mxu0 0
        %381 = vmatprep.mubr.bf16.mxu0 0
        %382 = vmatmul.mubr.bf16.gmra.mrb[0].mxu0 %v338
        %v383 = vpop.f32.mrb[0].mxu0
        %v384 = vadd.f32 0.0, %v383
        %v385 = vpop.f32.mrb[0].mxu0
        %v386 = vpop.f32.mrb[0].mxu0
        %v387 = vadd.f32 0.0, %v386
        %v388 = vpop.f32.mrb[0].mxu0
        %389 = vmatprep.mubr.bf16.mxu0 0
        %390 = vmatmul.mubr.bf16.gmra.mrb[0].mxu0 %v341
        %v391 = vpop.f32.mrb[0].mxu0
        %v392 = vadd.f32 0.0, %v391
        %v393 = vpop.f32.mrb[0].mxu0
        %v394 = vpop.f32.mrb[0].mxu0
        %v395 = vadd.f32 0.0, %v394
        %v396 = vpop.f32.mrb[0].mxu0
        %397 = vmatprep.mubr.bf16.mxu0 0
        %398 = vmatmul.mubr.bf16.gmra.mrb[0].mxu0 %v344
        %v399 = vpop.f32.mrb[0].mxu0
        %v400 = vadd.f32 0.0, %v399
        %v401 = vpop.f32.mrb[0].mxu0
        %v402 = vpop.f32.mrb[0].mxu0
        %v403 = vadd.f32 0.0, %v402
        %v404 = vpop.f32.mrb[0].mxu0
        %405 = vmatprep.mubr.bf16.mxu0 0
        %406 = vmatmul.mubr.bf16.gmra.mrb[0].mxu0 %v347
        %v407 = vpop.f32.mrb[0].mxu0
        %v408 = vadd.f32 0.0, %v407
        %v409 = vpop.f32.mrb[0].mxu0
        %v410 = vpop.f32.mrb[0].mxu0
        %v411 = vadd.f32 0.0, %v410
        %v412 = vpop.f32.mrb[0].mxu0
        %413 = vdwg.mxu0
        %v422 = vunpack.c.l.b16 %v259
        %v423 = vunpack.c.l.b16 %v260
        %v424 = vunpack.c.l.b16 %v261
        %v425 = vunpack.c.l.b16 %v262
        %v426 = vunpack.c.l.b16 %v263
        %v427 = vunpack.c.l.b16 %v264
        %v428 = vunpack.c.l.b16 %v265
        %v429 = vunpack.c.l.b16 %v266
        %v430 = vpack.c.b16 %v423, %v422
        %v431 = vpack.c.b16 %v425, %v424
        %v432 = vpack.c.b16 %v427, %v426
        %v433 = vpack.c.b16 %v429, %v428
        %v442 = vunpack.c.l.b16 %v267
        %v443 = vunpack.c.l.b16 %v268
        %v444 = vunpack.c.l.b16 %v269
        %v445 = vunpack.c.l.b16 %v270
        %v446 = vunpack.c.l.b16 %v271
        %v447 = vunpack.c.l.b16 %v272
        %v448 = vunpack.c.l.b16 %v273
        %v449 = vunpack.c.l.b16 %v274
        %v450 = vpack.c.b16 %v443, %v442
        %v451 = vpack.c.b16 %v445, %v444
        %v452 = vpack.c.b16 %v447, %v446
        %v453 = vpack.c.b16 %v449, %v448
        %v459 = vsel %vm336, %v430, 0
        %v462 = vsel %vm336, %v431, 0
        %v465 = vsel %vm336, %v432, 0
        %v468 = vsel %vm336, %v433, 0
        %470 = vmatprep.subr.bf16.mxu0 0
        %471 = vmatpush1.bf16.msra.mxu0 %v450
        %472 = vmatprep.subr.bf16.mxu0 0
        %473 = vmatpush1.bf16.msra.mxu0 %v451
        %474 = vmatprep.subr.bf16.mxu0 0
        %475 = vmatpush1.bf16.msra.mxu0 %v452
        %476 = vmatprep.subr.bf16.mxu0 0
        %477 = vmatpush1.bf16.msra.mxu0 %v453
        %478 = vmatprep.subr.bf16.mxu0 0
        %479 = vmatpush1.bf16.msra.mxu0 0
        %480 = vmatprep.subr.bf16.mxu0 0
        %481 = vmatpush1.bf16.msra.mxu0 0
        %482 = vmatprep.subr.bf16.mxu0 0
        %483 = vmatpush1.bf16.msra.mxu0 0
        %484 = vmatprep.subr.bf16.mxu0 0
        %485 = vmatpush1.bf16.msra.mxu0 0
        %486 = vmatprep.subr.bf16.mxu0 0
        %487 = vmatpush1.bf16.msra.mxu0 0
        %488 = vmatprep.subr.bf16.mxu0 0
        %489 = vmatpush1.bf16.msra.mxu0 0
        %490 = vmatprep.subr.bf16.mxu0 0
        %491 = vmatpush1.bf16.msra.mxu0 0
        %492 = vmatprep.subr.bf16.mxu0 0
        %493 = vmatpush1.bf16.msra.mxu0 0
        %494 = vmatprep.subr.bf16.mxu0 0
        %495 = vmatpush1.bf16.msra.mxu0 0
        %496 = vmatprep.subr.bf16.mxu0 0
        %497 = vmatpush1.bf16.msra.mxu0 0
        %498 = vmatprep.subr.bf16.mxu0 0
        %499 = vmatpush1.bf16.msra.mxu0 0
        %500 = vmatprep.subr.bf16.mxu0 0
        %501 = vmatpush1.bf16.msra.mxu0 0
        %502 = vmatprep.mubr.bf16.mxu0 0
        %503 = vmatmul.mubr.bf16.gmra.mrb[0].mxu0 %v459
        %v504 = vpop.f32.mrb[0].mxu0
        %v505 = vadd.f32 %v384, %v504
        %v506 = vpop.f32.mrb[0].mxu0
        %v507 = vpop.f32.mrb[0].mxu0
        %v508 = vadd.f32 %v387, %v507
        %v509 = vpop.f32.mrb[0].mxu0
        %510 = vmatprep.mubr.bf16.mxu0 0
        %511 = vmatmul.mubr.bf16.gmra.mrb[0].mxu0 %v462
        %v512 = vpop.f32.mrb[0].mxu0
        %v513 = vadd.f32 %v392, %v512
        %v514 = vpop.f32.mrb[0].mxu0
        %v515 = vpop.f32.mrb[0].mxu0
        %v516 = vadd.f32 %v395, %v515
        %v517 = vpop.f32.mrb[0].mxu0
        %518 = vmatprep.mubr.bf16.mxu0 0
        %519 = vmatmul.mubr.bf16.gmra.mrb[0].mxu0 %v465
        %v520 = vpop.f32.mrb[0].mxu0
        %v521 = vadd.f32 %v400, %v520
        %v522 = vpop.f32.mrb[0].mxu0
        %v523 = vpop.f32.mrb[0].mxu0
        %v524 = vadd.f32 %v403, %v523
        %v525 = vpop.f32.mrb[0].mxu0
        %526 = vmatprep.mubr.bf16.mxu0 0
        %527 = vmatmul.mubr.bf16.gmra.mrb[0].mxu0 %v468
        %v528 = vpop.f32.mrb[0].mxu0
        %v529 = vadd.f32 %v408, %v528
        %v530 = vpop.f32.mrb[0].mxu0
        %v531 = vpop.f32.mrb[0].mxu0
        %v532 = vadd.f32 %v411, %v531
        %v533 = vpop.f32.mrb[0].mxu0
        %534 = vdwg.mxu0
        %v535 = vld [vmem:[%s249] sm:$0xf]
        %v536 = vld [vmem:[%s249 + $0x4] sm:$0x1]
        %v537 = vld [vmem:[%s249 + $0x8] sm:$0xf]
        %v538 = vld [vmem:[%s249 + $0xc] sm:$0x1]
        %v539 = vld [vmem:[%s249 + $0x10] sm:$0xf]
        %v540 = vld [vmem:[%s249 + $0x14] sm:$0x1]
        %v541 = vld [vmem:[%s249 + $0x18] sm:$0xf]
        %v542 = vld [vmem:[%s249 + $0x1c] sm:$0x1]
        %v543 = vld [vmem:[%s249 + $0x20] sm:$0xf]
        %v544 = vld [vmem:[%s249 + $0x24] sm:$0x1]
        %v545 = vld [vmem:[%s249 + $0x28] sm:$0xf]
        %v546 = vld [vmem:[%s249 + $0x2c] sm:$0x1]
        %v547 = vld [vmem:[%s249 + $0x30] sm:$0xf]
        %v548 = vld [vmem:[%s249 + $0x34] sm:$0x1]
        %v549 = vld [vmem:[%s249 + $0x38] sm:$0xf]
        %v550 = vld [vmem:[%s249 + $0x3c] sm:$0x1]
        %vm551 = vsmask.f32 3328
        %vm552 = vsmask.f32 7440
        %vm553 = vmor %vm551, %vm552
        %v555 = vshrl.u32 %v535, 16
        %v557 = vrot.slane %v555, 4
        %v558 = vshll.u32 %v535, 16
        %v560 = vrot.slane %v558, 5
        %v561 = vor.u32 %v557, %v560
        %v562 = vrot.slane %v561, 4
        %v564 = vshll.u32 %v536, 16
        %v566 = vrot.slane %v564, 5
        %v567 = vsel %vm553, %v562, %v566
        %v569 = vshrl.u32 %v537, 16
        %v571 = vrot.slane %v569, 4
        %v572 = vshll.u32 %v537, 16
        %v574 = vrot.slane %v572, 5
        %v575 = vor.u32 %v571, %v574
        %v576 = vrot.slane %v575, 4
        %v578 = vshll.u32 %v538, 16
        %v580 = vrot.slane %v578, 5
        %v581 = vsel %vm553, %v576, %v580
        %v583 = vshrl.u32 %v539, 16
        %v585 = vrot.slane %v583, 4
        %v586 = vshll.u32 %v539, 16
        %v588 = vrot.slane %v586, 5
        %v589 = vor.u32 %v585, %v588
        %v590 = vrot.slane %v589, 4
        %v592 = vshll.u32 %v540, 16
        %v594 = vrot.slane %v592, 5
        %v595 = vsel %vm553, %v590, %v594
        %v597 = vshrl.u32 %v541, 16
        %v599 = vrot.slane %v597, 4
        %v600 = vshll.u32 %v541, 16
        %v602 = vrot.slane %v600, 5
        %v603 = vor.u32 %v599, %v602
        %v604 = vrot.slane %v603, 4
        %v606 = vshll.u32 %v542, 16
        %v608 = vrot.slane %v606, 5
        %v609 = vsel %vm553, %v604, %v608
        %v611 = vshrl.u32 %v543, 16
        %v613 = vrot.slane %v611, 4
        %v614 = vshll.u32 %v543, 16
        %v616 = vrot.slane %v614, 5
        %v617 = vor.u32 %v613, %v616
        %v618 = vrot.slane %v617, 4
        %v620 = vshll.u32 %v544, 16
        %v622 = vrot.slane %v620, 5
        %v623 = vsel %vm553, %v618, %v622
        %v625 = vshrl.u32 %v545, 16
        %v627 = vrot.slane %v625, 4
        %v628 = vshll.u32 %v545, 16
        %v630 = vrot.slane %v628, 5
        %v631 = vor.u32 %v627, %v630
        %v632 = vrot.slane %v631, 4
        %v634 = vshll.u32 %v546, 16
        %v636 = vrot.slane %v634, 5
        %v637 = vsel %vm553, %v632, %v636
        %v639 = vshrl.u32 %v547, 16
        %v641 = vrot.slane %v639, 4
        %v642 = vshll.u32 %v547, 16
        %v644 = vrot.slane %v642, 5
        %v645 = vor.u32 %v641, %v644
        %v646 = vrot.slane %v645, 4
        %v648 = vshll.u32 %v548, 16
        %v650 = vrot.slane %v648, 5
        %v651 = vsel %vm553, %v646, %v650
        %v653 = vshrl.u32 %v549, 16
        %v655 = vrot.slane %v653, 4
        %v656 = vshll.u32 %v549, 16
        %v658 = vrot.slane %v656, 5
        %v659 = vor.u32 %v655, %v658
        %v660 = vrot.slane %v659, 4
        %v662 = vshll.u32 %v550, 16
        %v664 = vrot.slane %v662, 5
        %v665 = vsel %vm553, %v660, %v664
        %v666 = vld [vmem:[%s254 + $0x40] sm:$0xf]
        %v667 = vld [vmem:[%s254 + $0x44] sm:$0xf]
        %v668 = vld [vmem:[%s254 + $0x48] sm:$0xf]
        %v669 = vld [vmem:[%s254 + $0x4c] sm:$0xf]
        %v670 = vld [vmem:[%s254 + $0x50] sm:$0xf]
        %v671 = vld [vmem:[%s254 + $0x54] sm:$0xf]
        %v672 = vld [vmem:[%s254 + $0x58] sm:$0xf]
        %v673 = vld [vmem:[%s254 + $0x5c] sm:$0xf]
        %v674 = vunpack.c.l.b16 %v567
        %v675 = vunpack.c.l.b16 %v581
        %v676 = vunpack.c.l.b16 %v595
        %v677 = vunpack.c.l.b16 %v609
        %v678 = vunpack.c.l.b16 %v623
        %v679 = vunpack.c.l.b16 %v637
        %v680 = vunpack.c.l.b16 %v651
        %v681 = vunpack.c.l.b16 %v665
        %v682 = vpack.c.b16 %v675, %v674
        %v683 = vpack.c.b16 %v677, %v676
        %v684 = vpack.c.b16 %v679, %v678
        %v685 = vpack.c.b16 %v681, %v680
        %v694 = vunpack.c.l.b16 %v666
        %v695 = vunpack.c.l.b16 %v667
        %v696 = vunpack.c.l.b16 %v668
        %v697 = vunpack.c.l.b16 %v669
        %v698 = vunpack.c.l.b16 %v670
        %v699 = vunpack.c.l.b16 %v671
        %v700 = vunpack.c.l.b16 %v672
        %v701 = vunpack.c.l.b16 %v673
        %v702 = vpack.c.b16 %v695, %v694
        %v703 = vpack.c.b16 %v697, %v696
        %v704 = vpack.c.b16 %v699, %v698
        %v705 = vpack.c.b16 %v701, %v700
        %v711 = vsel %vm336, %v682, 0
        %v714 = vsel %vm336, %v683, 0
        %v717 = vsel %vm336, %v684, 0
        %v720 = vsel %vm336, %v685, 0
        %722 = vmatprep.subr.bf16.mxu0 0
        %723 = vmatpush1.bf16.msra.mxu0 %v702
        %724 = vmatprep.subr.bf16.mxu0 0
        %725 = vmatpush1.bf16.msra.mxu0 %v703
        %726 = vmatprep.subr.bf16.mxu0 0
        %727 = vmatpush1.bf16.msra.mxu0 %v704
        %728 = vmatprep.subr.bf16.mxu0 0
        %729 = vmatpush1.bf16.msra.mxu0 %v705
        %730 = vmatprep.subr.bf16.mxu0 0
        %731 = vmatpush1.bf16.msra.mxu0 0
        %732 = vmatprep.subr.bf16.mxu0 0
        %733 = vmatpush1.bf16.msra.mxu0 0
        %734 = vmatprep.subr.bf16.mxu0 0
        %735 = vmatpush1.bf16.msra.mxu0 0
        %736 = vmatprep.subr.bf16.mxu0 0
        %737 = vmatpush1.bf16.msra.mxu0 0
        %738 = vmatprep.subr.bf16.mxu0 0
        %739 = vmatpush1.bf16.msra.mxu0 0
        %740 = vmatprep.subr.bf16.mxu0 0
        %741 = vmatpush1.bf16.msra.mxu0 0
        %742 = vmatprep.subr.bf16.mxu0 0
        %743 = vmatpush1.bf16.msra.mxu0 0
        %744 = vmatprep.subr.bf16.mxu0 0
        %745 = vmatpush1.bf16.msra.mxu0 0
        %746 = vmatprep.subr.bf16.mxu0 0
        %747 = vmatpush1.bf16.msra.mxu0 0
        %748 = vmatprep.subr.bf16.mxu0 0
        %749 = vmatpush1.bf16.msra.mxu0 0
        %750 = vmatprep.subr.bf16.mxu0 0
        %751 = vmatpush1.bf16.msra.mxu0 0
        %752 = vmatprep.subr.bf16.mxu0 0
        %753 = vmatpush1.bf16.msra.mxu0 0
        %754 = vmatprep.mubr.bf16.mxu0 0
        %755 = vmatmul.mubr.bf16.gmra.mrb[0].mxu0 %v711
        %v756 = vpop.f32.mrb[0].mxu0
        %v757 = vadd.f32 0.0, %v756
        %v758 = vpop.f32.mrb[0].mxu0
        %v759 = vpop.f32.mrb[0].mxu0
        %v760 = vadd.f32 0.0, %v759
        %v761 = vpop.f32.mrb[0].mxu0
        %762 = vmatprep.mubr.bf16.mxu0 0
        %763 = vmatmul.mubr.bf16.gmra.mrb[0].mxu0 %v714
        %v764 = vpop.f32.mrb[0].mxu0
        %v765 = vadd.f32 0.0, %v764
        %v766 = vpop.f32.mrb[0].mxu0
        %v767 = vpop.f32.mrb[0].mxu0
        %v768 = vadd.f32 0.0, %v767
        %v769 = vpop.f32.mrb[0].mxu0
        %770 = vmatprep.mubr.bf16.mxu0 0
        %771 = vmatmul.mubr.bf16.gmra.mrb[0].mxu0 %v717
        %v772 = vpop.f32.mrb[0].mxu0
        %v773 = vadd.f32 0.0, %v772
        %v774 = vpop.f32.mrb[0].mxu0
        %v775 = vpop.f32.mrb[0].mxu0
        %v776 = vadd.f32 0.0, %v775
        %v777 = vpop.f32.mrb[0].mxu0
        %778 = vmatprep.mubr.bf16.mxu0 0
        %779 = vmatmul.mubr.bf16.gmra.mrb[0].mxu0 %v720
        %v780 = vpop.f32.mrb[0].mxu0
        %v781 = vadd.f32 0.0, %v780
        %v782 = vpop.f32.mrb[0].mxu0
        %v783 = vpop.f32.mrb[0].mxu0
        %v784 = vadd.f32 0.0, %v783
        %v785 = vpop.f32.mrb[0].mxu0
        %786 = vdwg.mxu0
        %v787 = vadd.f32 %v505, %v757
        %v788 = vadd.f32 %v508, %v760
        %v789 = vadd.f32 %v513, %v765
        %v790 = vadd.f32 %v516, %v768
        %v791 = vadd.f32 %v521, %v773
        %v792 = vadd.f32 %v524, %v776
        %v793 = vadd.f32 %v529, %v781
        %v794 = vadd.f32 %v532, %v784
        %s795 = scalar_lea.vmem %s249, 144
        %v796 = vld [vmem:[%s795] sm:$0xf]
        %v797 = vld [vmem:[%s795 + $0x8] sm:$0xf]
        %v798 = vld [vmem:[%s795 + $0x10] sm:$0xf]
        %v799 = vld [vmem:[%s795 + $0x18] sm:$0xf]
        %v800 = vld [vmem:[%s795 + $0x20] sm:$0xf]
        %v801 = vld [vmem:[%s795 + $0x28] sm:$0xf]
        %v802 = vld [vmem:[%s795 + $0x30] sm:$0xf]
        %v803 = vld [vmem:[%s795 + $0x38] sm:$0xf]
        %v804 = vld [vmem:[%s254 + $0x60] sm:$0xf]
        %v805 = vld [vmem:[%s254 + $0x64] sm:$0xf]
        %v806 = vld [vmem:[%s254 + $0x68] sm:$0xf]
        %v807 = vld [vmem:[%s254 + $0x6c] sm:$0xf]
        %v808 = vld [vmem:[%s254 + $0x70] sm:$0xf]
        %v809 = vld [vmem:[%s254 + $0x74] sm:$0xf]
        %v810 = vld [vmem:[%s254 + $0x78] sm:$0xf]
        %v811 = vld [vmem:[%s254 + $0x7c] sm:$0xf]
        %v820 = vunpack.c.l.b16 %v796
        %v821 = vunpack.c.l.b16 %v797
        %v822 = vunpack.c.l.b16 %v798
        %v823 = vunpack.c.l.b16 %v799
        %v824 = vunpack.c.l.b16 %v800
        %v825 = vunpack.c.l.b16 %v801
        %v826 = vunpack.c.l.b16 %v802
        %v827 = vunpack.c.l.b16 %v803
        %v828 = vpack.c.b16 %v821, %v820
        %v829 = vpack.c.b16 %v823, %v822
        %v830 = vpack.c.b16 %v825, %v824
        %v831 = vpack.c.b16 %v827, %v826
        %v840 = vunpack.c.l.b16 %v804
        %v841 = vunpack.c.l.b16 %v805
        %v842 = vunpack.c.l.b16 %v806
        %v843 = vunpack.c.l.b16 %v807
        %v844 = vunpack.c.l.b16 %v808
        %v845 = vunpack.c.l.b16 %v809
        %v846 = vunpack.c.l.b16 %v810
        %v847 = vunpack.c.l.b16 %v811
        %v848 = vpack.c.b16 %v841, %v840
        %v849 = vpack.c.b16 %v843, %v842
        %v850 = vpack.c.b16 %v845, %v844
        %v851 = vpack.c.b16 %v847, %v846
        %v857 = vsel %vm336, %v828, 0
        %v860 = vsel %vm336, %v829, 0
        %v863 = vsel %vm336, %v830, 0
        %v866 = vsel %vm336, %v831, 0
        %868 = vmatprep.subr.bf16.mxu0 0
        %869 = vmatpush1.bf16.msra.mxu0 %v848
        %870 = vmatprep.subr.bf16.mxu0 0
        %871 = vmatpush1.bf16.msra.mxu0 %v849
        %872 = vmatprep.subr.bf16.mxu0 0
        %873 = vmatpush1.bf16.msra.mxu0 %v850
        %874 = vmatprep.subr.bf16.mxu0 0
        %875 = vmatpush1.bf16.msra.mxu0 %v851
        %876 = vmatprep.subr.bf16.mxu0 0
        %877 = vmatpush1.bf16.msra.mxu0 0
        %878 = vmatprep.subr.bf16.mxu0 0
        %879 = vmatpush1.bf16.msra.mxu0 0
        %880 = vmatprep.subr.bf16.mxu0 0
        %881 = vmatpush1.bf16.msra.mxu0 0
        %882 = vmatprep.subr.bf16.mxu0 0
        %883 = vmatpush1.bf16.msra.mxu0 0
        %884 = vmatprep.subr.bf16.mxu0 0
        %885 = vmatpush1.bf16.msra.mxu0 0
        %886 = vmatprep.subr.bf16.mxu0 0
        %887 = vmatpush1.bf16.msra.mxu0 0
        %888 = vmatprep.subr.bf16.mxu0 0
        %889 = vmatpush1.bf16.msra.mxu0 0
        %890 = vmatprep.subr.bf16.mxu0 0
        %891 = vmatpush1.bf16.msra.mxu0 0
        %892 = vmatprep.subr.bf16.mxu0 0
        %893 = vmatpush1.bf16.msra.mxu0 0
        %894 = vmatprep.subr.bf16.mxu0 0
        %895 = vmatpush1.bf16.msra.mxu0 0
        %896 = vmatprep.subr.bf16.mxu0 0
        %897 = vmatpush1.bf16.msra.mxu0 0
        %898 = vmatprep.subr.bf16.mxu0 0
        %899 = vmatpush1.bf16.msra.mxu0 0
        %900 = vmatprep.mubr.bf16.mxu0 0
        %901 = vmatmul.mubr.bf16.gmra.mrb[0].mxu0 %v857
        %v902 = vpop.f32.mrb[0].mxu0
        %v903 = vadd.f32 0.0, %v902
        %v904 = vpop.f32.mrb[0].mxu0
        %v905 = vpop.f32.mrb[0].mxu0
        %v906 = vadd.f32 0.0, %v905
        %v907 = vpop.f32.mrb[0].mxu0
        %908 = vmatprep.mubr.bf16.mxu0 0
        %909 = vmatmul.mubr.bf16.gmra.mrb[0].mxu0 %v860
        %v910 = vpop.f32.mrb[0].mxu0
        %v911 = vadd.f32 0.0, %v910
        %v912 = vpop.f32.mrb[0].mxu0
        %v913 = vpop.f32.mrb[0].mxu0
        %v914 = vadd.f32 0.0, %v913
        %v915 = vpop.f32.mrb[0].mxu0
        %916 = vmatprep.mubr.bf16.mxu0 0
        %917 = vmatmul.mubr.bf16.gmra.mrb[0].mxu0 %v863
        %v918 = vpop.f32.mrb[0].mxu0
        %v919 = vadd.f32 0.0, %v918
        %v920 = vpop.f32.mrb[0].mxu0
        %v921 = vpop.f32.mrb[0].mxu0
        %v922 = vadd.f32 0.0, %v921
        %v923 = vpop.f32.mrb[0].mxu0
        %924 = vmatprep.mubr.bf16.mxu0 0
        %925 = vmatmul.mubr.bf16.gmra.mrb[0].mxu0 %v866
        %v926 = vpop.f32.mrb[0].mxu0
        %v927 = vadd.f32 0.0, %v926
        %v928 = vpop.f32.mrb[0].mxu0
        %v929 = vpop.f32.mrb[0].mxu0
        %v930 = vadd.f32 0.0, %v929
        %v931 = vpop.f32.mrb[0].mxu0
        %932 = vdwg.mxu0
        %v933 = vadd.f32 %v787, %v903
        %v934 = vadd.f32 %v788, %v906
        %v935 = vadd.f32 %v789, %v911
        %v936 = vadd.f32 %v790, %v914
        %v937 = vadd.f32 %v791, %v919
        %v938 = vadd.f32 %v792, %v922
        %v939 = vadd.f32 %v793, %v927
        %v940 = vadd.f32 %v794, %v930
        %s941 = scalar_lea.vmem %s249, 216
        %v942 = vld [vmem:[%s941] sm:$0xf]
        %v943 = vld [vmem:[%s941 + $0x8] sm:$0xf]
        %v944 = vld [vmem:[%s941 + $0x10] sm:$0xf]
        %v945 = vld [vmem:[%s941 + $0x18] sm:$0xf]
        %v946 = vld [vmem:[%s941 + $0x20] sm:$0xf]
        %v947 = vld [vmem:[%s941 + $0x28] sm:$0xf]
        %v948 = vld [vmem:[%s941 + $0x30] sm:$0xf]
        %v949 = vld [vmem:[%s941 + $0x38] sm:$0xf]
        %v950 = vld [vmem:[%s254 + $0x80] sm:$0xf]
        %v951 = vld [vmem:[%s254 + $0x84] sm:$0xf]
        %v952 = vld [vmem:[%s254 + $0x88] sm:$0xf]
        %v953 = vld [vmem:[%s254 + $0x8c] sm:$0xf]
        %v954 = vld [vmem:[%s254 + $0x90] sm:$0xf]
        %v955 = vld [vmem:[%s254 + $0x94] sm:$0xf]
        %v956 = vld [vmem:[%s254 + $0x98] sm:$0xf]
        %v957 = vld [vmem:[%s254 + $0x9c] sm:$0xf]
        %v966 = vunpack.c.l.b16 %v942
        %v967 = vunpack.c.l.b16 %v943
        %v968 = vunpack.c.l.b16 %v944
        %v969 = vunpack.c.l.b16 %v945
        %v970 = vunpack.c.l.b16 %v946
        %v971 = vunpack.c.l.b16 %v947
        %v972 = vunpack.c.l.b16 %v948
        %v973 = vunpack.c.l.b16 %v949
        %v974 = vpack.c.b16 %v967, %v966
        %v975 = vpack.c.b16 %v969, %v968
        %v976 = vpack.c.b16 %v971, %v970
        %v977 = vpack.c.b16 %v973, %v972
        %v986 = vunpack.c.l.b16 %v950
        %v987 = vunpack.c.l.b16 %v951
        %v988 = vunpack.c.l.b16 %v952
        %v989 = vunpack.c.l.b16 %v953
        %v990 = vunpack.c.l.b16 %v954
        %v991 = vunpack.c.l.b16 %v955
        %v992 = vunpack.c.l.b16 %v956
        %v993 = vunpack.c.l.b16 %v957
        %v994 = vpack.c.b16 %v987, %v986
        %v995 = vpack.c.b16 %v989, %v988
        %v996 = vpack.c.b16 %v991, %v990
        %v997 = vpack.c.b16 %v993, %v992
        %v1003 = vsel %vm336, %v974, 0
        %v1006 = vsel %vm336, %v975, 0
        %v1009 = vsel %vm336, %v976, 0
        %v1012 = vsel %vm336, %v977, 0
        %1014 = vmatprep.subr.bf16.mxu0 0
        %1015 = vmatpush1.bf16.msra.mxu0 %v994
        %1016 = vmatprep.subr.bf16.mxu0 0
        %1017 = vmatpush1.bf16.msra.mxu0 %v995
        %1018 = vmatprep.subr.bf16.mxu0 0
        %1019 = vmatpush1.bf16.msra.mxu0 %v996
        %1020 = vmatprep.subr.bf16.mxu0 0
        %1021 = vmatpush1.bf16.msra.mxu0 %v997
        %1022 = vmatprep.subr.bf16.mxu0 0
        %1023 = vmatpush1.bf16.msra.mxu0 0
        %1024 = vmatprep.subr.bf16.mxu0 0
        %1025 = vmatpush1.bf16.msra.mxu0 0
        %1026 = vmatprep.subr.bf16.mxu0 0
        %1027 = vmatpush1.bf16.msra.mxu0 0
        %1028 = vmatprep.subr.bf16.mxu0 0
        %1029 = vmatpush1.bf16.msra.mxu0 0
        %1030 = vmatprep.subr.bf16.mxu0 0
        %1031 = vmatpush1.bf16.msra.mxu0 0
        %1032 = vmatprep.subr.bf16.mxu0 0
        %1033 = vmatpush1.bf16.msra.mxu0 0
        %1034 = vmatprep.subr.bf16.mxu0 0
        %1035 = vmatpush1.bf16.msra.mxu0 0
        %1036 = vmatprep.subr.bf16.mxu0 0
        %1037 = vmatpush1.bf16.msra.mxu0 0
        %1038 = vmatprep.subr.bf16.mxu0 0
        %1039 = vmatpush1.bf16.msra.mxu0 0
        %1040 = vmatprep.subr.bf16.mxu0 0
        %1041 = vmatpush1.bf16.msra.mxu0 0
        %1042 = vmatprep.subr.bf16.mxu0 0
        %1043 = vmatpush1.bf16.msra.mxu0 0
        %1044 = vmatprep.subr.bf16.mxu0 0
        %1045 = vmatpush1.bf16.msra.mxu0 0
        %1046 = vmatprep.mubr.bf16.mxu0 0
        %1047 = vmatmul.mubr.bf16.gmra.mrb[0].mxu0 %v1003
        %v1048 = vpop.f32.mrb[0].mxu0
        %v1049 = vadd.f32 0.0, %v1048
        %v1050 = vpop.f32.mrb[0].mxu0
        %v1051 = vpop.f32.mrb[0].mxu0
        %v1052 = vadd.f32 0.0, %v1051
        %v1053 = vpop.f32.mrb[0].mxu0
        %1054 = vmatprep.mubr.bf16.mxu0 0
        %1055 = vmatmul.mubr.bf16.gmra.mrb[0].mxu0 %v1006
        %v1056 = vpop.f32.mrb[0].mxu0
        %v1057 = vadd.f32 0.0, %v1056
        %v1058 = vpop.f32.mrb[0].mxu0
        %v1059 = vpop.f32.mrb[0].mxu0
        %v1060 = vadd.f32 0.0, %v1059
        %v1061 = vpop.f32.mrb[0].mxu0
        %1062 = vmatprep.mubr.bf16.mxu0 0
        %1063 = vmatmul.mubr.bf16.gmra.mrb[0].mxu0 %v1009
        %v1064 = vpop.f32.mrb[0].mxu0
        %v1065 = vadd.f32 0.0, %v1064
        %v1066 = vpop.f32.mrb[0].mxu0
        %v1067 = vpop.f32.mrb[0].mxu0
        %v1068 = vadd.f32 0.0, %v1067
        %v1069 = vpop.f32.mrb[0].mxu0
        %1070 = vmatprep.mubr.bf16.mxu0 0
        %1071 = vmatmul.mubr.bf16.gmra.mrb[0].mxu0 %v1012
        %v1072 = vpop.f32.mrb[0].mxu0
        %v1073 = vadd.f32 0.0, %v1072
        %v1074 = vpop.f32.mrb[0].mxu0
        %v1075 = vpop.f32.mrb[0].mxu0
        %v1076 = vadd.f32 0.0, %v1075
        %v1077 = vpop.f32.mrb[0].mxu0
        %1078 = vdwg.mxu0
        %v1079 = vadd.f32 %v933, %v1049
        %v1080 = vadd.f32 %v934, %v1052
        %v1081 = vadd.f32 %v935, %v1057
        %v1082 = vadd.f32 %v936, %v1060
        %v1083 = vadd.f32 %v937, %v1065
        %v1084 = vadd.f32 %v938, %v1068
        %v1085 = vadd.f32 %v939, %v1073
        %v1086 = vadd.f32 %v940, %v1076
        %v1087 = vld [vmem:[%s795] sm:$0xf]
        %v1088 = vld [vmem:[%s795 + $0x4] sm:$0x1]
        %v1089 = vld [vmem:[%s795 + $0x8] sm:$0xf]
        %v1090 = vld [vmem:[%s795 + $0xc] sm:$0x1]
        %v1091 = vld [vmem:[%s795 + $0x10] sm:$0xf]
        %v1092 = vld [vmem:[%s795 + $0x14] sm:$0x1]
        %v1093 = vld [vmem:[%s795 + $0x18] sm:$0xf]
        %v1094 = vld [vmem:[%s795 + $0x1c] sm:$0x1]
        %v1095 = vld [vmem:[%s795 + $0x20] sm:$0xf]
        %v1096 = vld [vmem:[%s795 + $0x24] sm:$0x1]
        %v1097 = vld [vmem:[%s795 + $0x28] sm:$0xf]
        %v1098 = vld [vmem:[%s795 + $0x2c] sm:$0x1]
        %v1099 = vld [vmem:[%s795 + $0x30] sm:$0xf]
        %v1100 = vld [vmem:[%s795 + $0x34] sm:$0x1]
        %v1101 = vld [vmem:[%s795 + $0x38] sm:$0xf]
        %v1102 = vld [vmem:[%s795 + $0x3c] sm:$0x1]
        %v1104 = vshrl.u32 %v1087, 16
        %v1106 = vrot.slane %v1104, 4
        %v1107 = vshll.u32 %v1087, 16
        %v1109 = vrot.slane %v1107, 5
        %v1110 = vor.u32 %v1106, %v1109
        %v1111 = vrot.slane %v1110, 4
        %v1113 = vshll.u32 %v1088, 16
        %v1115 = vrot.slane %v1113, 5
        %v1116 = vsel %vm553, %v1111, %v1115
        %v1118 = vshrl.u32 %v1089, 16
        %v1120 = vrot.slane %v1118, 4
        %v1121 = vshll.u32 %v1089, 16
        %v1123 = vrot.slane %v1121, 5
        %v1124 = vor.u32 %v1120, %v1123
        %v1125 = vrot.slane %v1124, 4
        %v1127 = vshll.u32 %v1090, 16
        %v1129 = vrot.slane %v1127, 5
        %v1130 = vsel %vm553, %v1125, %v1129
        %v1132 = vshrl.u32 %v1091, 16
        %v1134 = vrot.slane %v1132, 4
        %v1135 = vshll.u32 %v1091, 16
        %v1137 = vrot.slane %v1135, 5
        %v1138 = vor.u32 %v1134, %v1137
        %v1139 = vrot.slane %v1138, 4
        %v1141 = vshll.u32 %v1092, 16
        %v1143 = vrot.slane %v1141, 5
        %v1144 = vsel %vm553, %v1139, %v1143
        %v1146 = vshrl.u32 %v1093, 16
        %v1148 = vrot.slane %v1146, 4
        %v1149 = vshll.u32 %v1093, 16
        %v1151 = vrot.slane %v1149, 5
        %v1152 = vor.u32 %v1148, %v1151
        %v1153 = vrot.slane %v1152, 4
        %v1155 = vshll.u32 %v1094, 16
        %v1157 = vrot.slane %v1155, 5
        %v1158 = vsel %vm553, %v1153, %v1157
        %v1160 = vshrl.u32 %v1095, 16
        %v1162 = vrot.slane %v1160, 4
        %v1163 = vshll.u32 %v1095, 16
        %v1165 = vrot.slane %v1163, 5
        %v1166 = vor.u32 %v1162, %v1165
        %v1167 = vrot.slane %v1166, 4
        %v1169 = vshll.u32 %v1096, 16
        %v1171 = vrot.slane %v1169, 5
        %v1172 = vsel %vm553, %v1167, %v1171
        %v1174 = vshrl.u32 %v1097, 16
        %v1176 = vrot.slane %v1174, 4
        %v1177 = vshll.u32 %v1097, 16
        %v1179 = vrot.slane %v1177, 5
        %v1180 = vor.u32 %v1176, %v1179
        %v1181 = vrot.slane %v1180, 4
        %v1183 = vshll.u32 %v1098, 16
        %v1185 = vrot.slane %v1183, 5
        %v1186 = vsel %vm553, %v1181, %v1185
        %v1188 = vshrl.u32 %v1099, 16
        %v1190 = vrot.slane %v1188, 4
        %v1191 = vshll.u32 %v1099, 16
        %v1193 = vrot.slane %v1191, 5
        %v1194 = vor.u32 %v1190, %v1193
        %v1195 = vrot.slane %v1194, 4
        %v1197 = vshll.u32 %v1100, 16
        %v1199 = vrot.slane %v1197, 5
        %v1200 = vsel %vm553, %v1195, %v1199
        %v1202 = vshrl.u32 %v1101, 16
        %v1204 = vrot.slane %v1202, 4
        %v1205 = vshll.u32 %v1101, 16
        %v1207 = vrot.slane %v1205, 5
        %v1208 = vor.u32 %v1204, %v1207
        %v1209 = vrot.slane %v1208, 4
        %v1211 = vshll.u32 %v1102, 16
        %v1213 = vrot.slane %v1211, 5
        %v1214 = vsel %vm553, %v1209, %v1213
        %v1215 = vld [vmem:[%s254 + $0xa0] sm:$0xf]
        %v1216 = vld [vmem:[%s254 + $0xa4] sm:$0xf]
        %v1217 = vld [vmem:[%s254 + $0xa8] sm:$0xf]
        %v1218 = vld [vmem:[%s254 + $0xac] sm:$0xf]
        %v1219 = vld [vmem:[%s254 + $0xb0] sm:$0xf]
        %v1220 = vld [vmem:[%s254 + $0xb4] sm:$0xf]
        %v1221 = vld [vmem:[%s254 + $0xb8] sm:$0xf]
        %v1222 = vld [vmem:[%s254 + $0xbc] sm:$0xf]
        %v1223 = vunpack.c.l.b16 %v1116
        %v1224 = vunpack.c.l.b16 %v1130
        %v1225 = vunpack.c.l.b16 %v1144
        %v1226 = vunpack.c.l.b16 %v1158
        %v1227 = vunpack.c.l.b16 %v1172
        %v1228 = vunpack.c.l.b16 %v1186
        %v1229 = vunpack.c.l.b16 %v1200
        %v1230 = vunpack.c.l.b16 %v1214
        %v1231 = vpack.c.b16 %v1224, %v1223
        %v1232 = vpack.c.b16 %v1226, %v1225
        %v1233 = vpack.c.b16 %v1228, %v1227
        %v1234 = vpack.c.b16 %v1230, %v1229
        %v1243 = vunpack.c.l.b16 %v1215
        %v1244 = vunpack.c.l.b16 %v1216
        %v1245 = vunpack.c.l.b16 %v1217
        %v1246 = vunpack.c.l.b16 %v1218
        %v1247 = vunpack.c.l.b16 %v1219
        %v1248 = vunpack.c.l.b16 %v1220
        %v1249 = vunpack.c.l.b16 %v1221
        %v1250 = vunpack.c.l.b16 %v1222
        %v1251 = vpack.c.b16 %v1244, %v1243
        %v1252 = vpack.c.b16 %v1246, %v1245
        %v1253 = vpack.c.b16 %v1248, %v1247
        %v1254 = vpack.c.b16 %v1250, %v1249
        %v1260 = vsel %vm336, %v1231, 0
        %v1263 = vsel %vm336, %v1232, 0
        %v1266 = vsel %vm336, %v1233, 0
        %v1269 = vsel %vm336, %v1234, 0
        %1271 = vmatprep.subr.bf16.mxu0 0
        %1272 = vmatpush1.bf16.msra.mxu0 %v1251
        %1273 = vmatprep.subr.bf16.mxu0 0
        %1274 = vmatpush1.bf16.msra.mxu0 %v1252
        %1275 = vmatprep.subr.bf16.mxu0 0
        %1276 = vmatpush1.bf16.msra.mxu0 %v1253
        %1277 = vmatprep.subr.bf16.mxu0 0
        %1278 = vmatpush1.bf16.msra.mxu0 %v1254
        %1279 = vmatprep.subr.bf16.mxu0 0
        %1280 = vmatpush1.bf16.msra.mxu0 0
        %1281 = vmatprep.subr.bf16.mxu0 0
        %1282 = vmatpush1.bf16.msra.mxu0 0
        %1283 = vmatprep.subr.bf16.mxu0 0
        %1284 = vmatpush1.bf16.msra.mxu0 0
        %1285 = vmatprep.subr.bf16.mxu0 0
        %1286 = vmatpush1.bf16.msra.mxu0 0
        %1287 = vmatprep.subr.bf16.mxu0 0
        %1288 = vmatpush1.bf16.msra.mxu0 0
        %1289 = vmatprep.subr.bf16.mxu0 0
        %1290 = vmatpush1.bf16.msra.mxu0 0
        %1291 = vmatprep.subr.bf16.mxu0 0
        %1292 = vmatpush1.bf16.msra.mxu0 0
        %1293 = vmatprep.subr.bf16.mxu0 0
        %1294 = vmatpush1.bf16.msra.mxu0 0
        %1295 = vmatprep.subr.bf16.mxu0 0
        %1296 = vmatpush1.bf16.msra.mxu0 0
        %1297 = vmatprep.subr.bf16.mxu0 0
        %1298 = vmatpush1.bf16.msra.mxu0 0
        %1299 = vmatprep.subr.bf16.mxu0 0
        %1300 = vmatpush1.bf16.msra.mxu0 0
        %1301 = vmatprep.subr.bf16.mxu0 0
        %1302 = vmatpush1.bf16.msra.mxu0 0
        %1303 = vmatprep.mubr.bf16.mxu0 0
        %1304 = vmatmul.mubr.bf16.gmra.mrb[0].mxu0 %v1260
        %v1305 = vpop.f32.mrb[0].mxu0
        %v1306 = vadd.f32 0.0, %v1305
        %v1307 = vpop.f32.mrb[0].mxu0
        %v1308 = vpop.f32.mrb[0].mxu0
        %v1309 = vadd.f32 0.0, %v1308
        %v1310 = vpop.f32.mrb[0].mxu0
        %1311 = vmatprep.mubr.bf16.mxu0 0
        %1312 = vmatmul.mubr.bf16.gmra.mrb[0].mxu0 %v1263
        %v1313 = vpop.f32.mrb[0].mxu0
        %v1314 = vadd.f32 0.0, %v1313
        %v1315 = vpop.f32.mrb[0].mxu0
        %v1316 = vpop.f32.mrb[0].mxu0
        %v1317 = vadd.f32 0.0, %v1316
        %v1318 = vpop.f32.mrb[0].mxu0
        %1319 = vmatprep.mubr.bf16.mxu0 0
        %1320 = vmatmul.mubr.bf16.gmra.mrb[0].mxu0 %v1266
        %v1321 = vpop.f32.mrb[0].mxu0
        %v1322 = vadd.f32 0.0, %v1321
        %v1323 = vpop.f32.mrb[0].mxu0
        %v1324 = vpop.f32.mrb[0].mxu0
        %v1325 = vadd.f32 0.0, %v1324
        %v1326 = vpop.f32.mrb[0].mxu0
        %1327 = vmatprep.mubr.bf16.mxu0 0
        %1328 = vmatmul.mubr.bf16.gmra.mrb[0].mxu0 %v1269
        %v1329 = vpop.f32.mrb[0].mxu0
        %v1330 = vadd.f32 0.0, %v1329
        %v1331 = vpop.f32.mrb[0].mxu0
        %v1332 = vpop.f32.mrb[0].mxu0
        %v1333 = vadd.f32 0.0, %v1332
        %v1334 = vpop.f32.mrb[0].mxu0
        %1335 = vdwg.mxu0
        %v1336 = vadd.f32 %v1079, %v1306
        %v1337 = vadd.f32 %v1080, %v1309
        %v1338 = vadd.f32 %v1081, %v1314
        %v1339 = vadd.f32 %v1082, %v1317
        %v1340 = vadd.f32 %v1083, %v1322
        %v1341 = vadd.f32 %v1084, %v1325
        %v1342 = vadd.f32 %v1085, %v1330
        %v1343 = vadd.f32 %v1086, %v1333
        %s1344 = scalar_lea.vmem %s249, 8
        %v1345 = vld [vmem:[%s1344] sm:$0xf]
        %v1346 = vld [vmem:[%s1344 + $0x8] sm:$0xf]
        %v1347 = vld [vmem:[%s1344 + $0x10] sm:$0xf]
        %v1348 = vld [vmem:[%s1344 + $0x18] sm:$0xf]
        %v1349 = vld [vmem:[%s1344 + $0x20] sm:$0xf]
        %v1350 = vld [vmem:[%s1344 + $0x28] sm:$0xf]
        %v1351 = vld [vmem:[%s1344 + $0x30] sm:$0xf]
        %v1352 = vld [vmem:[%s1344 + $0x38] sm:$0xf]
        %v1353 = vld [vmem:[%s254 + $0xc0] sm:$0xf]
        %v1354 = vld [vmem:[%s254 + $0xc4] sm:$0xf]
        %v1355 = vld [vmem:[%s254 + $0xc8] sm:$0xf]
        %v1356 = vld [vmem:[%s254 + $0xcc] sm:$0xf]
        %v1357 = vld [vmem:[%s254 + $0xd0] sm:$0xf]
        %v1358 = vld [vmem:[%s254 + $0xd4] sm:$0xf]
        %v1359 = vld [vmem:[%s254 + $0xd8] sm:$0xf]
        %v1360 = vld [vmem:[%s254 + $0xdc] sm:$0xf]
        %v1369 = vunpack.c.l.b16 %v1345
        %v1370 = vunpack.c.l.b16 %v1346
        %v1371 = vunpack.c.l.b16 %v1347
        %v1372 = vunpack.c.l.b16 %v1348
        %v1373 = vunpack.c.l.b16 %v1349
        %v1374 = vunpack.c.l.b16 %v1350
        %v1375 = vunpack.c.l.b16 %v1351
        %v1376 = vunpack.c.l.b16 %v1352
        %v1377 = vpack.c.b16 %v1370, %v1369
        %v1378 = vpack.c.b16 %v1372, %v1371
        %v1379 = vpack.c.b16 %v1374, %v1373
        %v1380 = vpack.c.b16 %v1376, %v1375
        %v1389 = vunpack.c.l.b16 %v1353
        %v1390 = vunpack.c.l.b16 %v1354
        %v1391 = vunpack.c.l.b16 %v1355
        %v1392 = vunpack.c.l.b16 %v1356
        %v1393 = vunpack.c.l.b16 %v1357
        %v1394 = vunpack.c.l.b16 %v1358
        %v1395 = vunpack.c.l.b16 %v1359
        %v1396 = vunpack.c.l.b16 %v1360
        %v1397 = vpack.c.b16 %v1390, %v1389
        %v1398 = vpack.c.b16 %v1392, %v1391
        %v1399 = vpack.c.b16 %v1394, %v1393
        %v1400 = vpack.c.b16 %v1396, %v1395
        %v1406 = vsel %vm336, %v1377, 0
        %v1409 = vsel %vm336, %v1378, 0
        %v1412 = vsel %vm336, %v1379, 0
        %v1415 = vsel %vm336, %v1380, 0
        %1417 = vmatprep.subr.bf16.mxu0 0
        %1418 = vmatpush1.bf16.msra.mxu0 %v1397
        %1419 = vmatprep.subr.bf16.mxu0 0
        %1420 = vmatpush1.bf16.msra.mxu0 %v1398
        %1421 = vmatprep.subr.bf16.mxu0 0
        %1422 = vmatpush1.bf16.msra.mxu0 %v1399
        %1423 = vmatprep.subr.bf16.mxu0 0
        %1424 = vmatpush1.bf16.msra.mxu0 %v1400
        %1425 = vmatprep.subr.bf16.mxu0 0
        %1426 = vmatpush1.bf16.msra.mxu0 0
        %1427 = vmatprep.subr.bf16.mxu0 0
        %1428 = vmatpush1.bf16.msra.mxu0 0
        %1429 = vmatprep.subr.bf16.mxu0 0
        %1430 = vmatpush1.bf16.msra.mxu0 0
        %1431 = vmatprep.subr.bf16.mxu0 0
        %1432 = vmatpush1.bf16.msra.mxu0 0
        %1433 = vmatprep.subr.bf16.mxu0 0
        %1434 = vmatpush1.bf16.msra.mxu0 0
        %1435 = vmatprep.subr.bf16.mxu0 0
        %1436 = vmatpush1.bf16.msra.mxu0 0
        %1437 = vmatprep.subr.bf16.mxu0 0
        %1438 = vmatpush1.bf16.msra.mxu0 0
        %1439 = vmatprep.subr.bf16.mxu0 0
        %1440 = vmatpush1.bf16.msra.mxu0 0
        %1441 = vmatprep.subr.bf16.mxu0 0
        %1442 = vmatpush1.bf16.msra.mxu0 0
        %1443 = vmatprep.subr.bf16.mxu0 0
        %1444 = vmatpush1.bf16.msra.mxu0 0
        %1445 = vmatprep.subr.bf16.mxu0 0
        %1446 = vmatpush1.bf16.msra.mxu0 0
        %1447 = vmatprep.subr.bf16.mxu0 0
        %1448 = vmatpush1.bf16.msra.mxu0 0
        %1449 = vmatprep.mubr.bf16.mxu0 0
        %1450 = vmatmul.mubr.bf16.gmra.mrb[0].mxu0 %v1406
        %v1451 = vpop.f32.mrb[0].mxu0
        %v1452 = vadd.f32 0.0, %v1451
        %v1453 = vpop.f32.mrb[0].mxu0
        %v1454 = vpop.f32.mrb[0].mxu0
        %v1455 = vadd.f32 0.0, %v1454
        %v1456 = vpop.f32.mrb[0].mxu0
        %1457 = vmatprep.mubr.bf16.mxu0 0
        %1458 = vmatmul.mubr.bf16.gmra.mrb[0].mxu0 %v1409
        %v1459 = vpop.f32.mrb[0].mxu0
        %v1460 = vadd.f32 0.0, %v1459
        %v1461 = vpop.f32.mrb[0].mxu0
        %v1462 = vpop.f32.mrb[0].mxu0
        %v1463 = vadd.f32 0.0, %v1462
        %v1464 = vpop.f32.mrb[0].mxu0
        %1465 = vmatprep.mubr.bf16.mxu0 0
        %1466 = vmatmul.mubr.bf16.gmra.mrb[0].mxu0 %v1412
        %v1467 = vpop.f32.mrb[0].mxu0
        %v1468 = vadd.f32 0.0, %v1467
        %v1469 = vpop.f32.mrb[0].mxu0
        %v1470 = vpop.f32.mrb[0].mxu0
        %v1471 = vadd.f32 0.0, %v1470
        %v1472 = vpop.f32.mrb[0].mxu0
        %1473 = vmatprep.mubr.bf16.mxu0 0
        %1474 = vmatmul.mubr.bf16.gmra.mrb[0].mxu0 %v1415
        %v1475 = vpop.f32.mrb[0].mxu0
        %v1476 = vadd.f32 0.0, %v1475
        %v1477 = vpop.f32.mrb[0].mxu0
        %v1478 = vpop.f32.mrb[0].mxu0
        %v1479 = vadd.f32 0.0, %v1478
        %v1480 = vpop.f32.mrb[0].mxu0
        %1481 = vdwg.mxu0
        %v1482 = vadd.f32 %v1336, %v1452
        %v1483 = vadd.f32 %v1337, %v1455
        %v1484 = vadd.f32 %v1338, %v1460
        %v1485 = vadd.f32 %v1339, %v1463
        %v1486 = vadd.f32 %v1340, %v1468
        %v1487 = vadd.f32 %v1341, %v1471
        %v1488 = vadd.f32 %v1342, %v1476
        %v1489 = vadd.f32 %v1343, %v1479
        %s1490 = scalar_lea.vmem %s249, 80
        %v1491 = vld [vmem:[%s1490] sm:$0xf]
        %v1492 = vld [vmem:[%s1490 + $0x8] sm:$0xf]
        %v1493 = vld [vmem:[%s1490 + $0x10] sm:$0xf]
        %v1494 = vld [vmem:[%s1490 + $0x18] sm:$0xf]
        %v1495 = vld [vmem:[%s1490 + $0x20] sm:$0xf]
        %v1496 = vld [vmem:[%s1490 + $0x28] sm:$0xf]
        %v1497 = vld [vmem:[%s1490 + $0x30] sm:$0xf]
        %v1498 = vld [vmem:[%s1490 + $0x38] sm:$0xf]
        %v1499 = vld [vmem:[%s254 + $0xe0] sm:$0xf]
        %v1500 = vld [vmem:[%s254 + $0xe4] sm:$0xf]
        %v1501 = vld [vmem:[%s254 + $0xe8] sm:$0xf]
        %v1502 = vld [vmem:[%s254 + $0xec] sm:$0xf]
        %v1503 = vld [vmem:[%s254 + $0xf0] sm:$0xf]
        %v1504 = vld [vmem:[%s254 + $0xf4] sm:$0xf]
        %v1505 = vld [vmem:[%s254 + $0xf8] sm:$0xf]
        %v1506 = vld [vmem:[%s254 + $0xfc] sm:$0xf]
        %v1515 = vunpack.c.l.b16 %v1491
        %v1516 = vunpack.c.l.b16 %v1492
        %v1517 = vunpack.c.l.b16 %v1493
        %v1518 = vunpack.c.l.b16 %v1494
        %v1519 = vunpack.c.l.b16 %v1495
        %v1520 = vunpack.c.l.b16 %v1496
        %v1521 = vunpack.c.l.b16 %v1497
        %v1522 = vunpack.c.l.b16 %v1498
        %v1523 = vpack.c.b16 %v1516, %v1515
        %v1524 = vpack.c.b16 %v1518, %v1517
        %v1525 = vpack.c.b16 %v1520, %v1519
        %v1526 = vpack.c.b16 %v1522, %v1521
        %v1535 = vunpack.c.l.b16 %v1499
        %v1536 = vunpack.c.l.b16 %v1500
        %v1537 = vunpack.c.l.b16 %v1501
        %v1538 = vunpack.c.l.b16 %v1502
        %v1539 = vunpack.c.l.b16 %v1503
        %v1540 = vunpack.c.l.b16 %v1504
        %v1541 = vunpack.c.l.b16 %v1505
        %v1542 = vunpack.c.l.b16 %v1506
        %v1543 = vpack.c.b16 %v1536, %v1535
        %v1544 = vpack.c.b16 %v1538, %v1537
        %v1545 = vpack.c.b16 %v1540, %v1539
        %v1546 = vpack.c.b16 %v1542, %v1541
        %v1552 = vsel %vm336, %v1523, 0
        %v1555 = vsel %vm336, %v1524, 0
        %v1558 = vsel %vm336, %v1525, 0
        %v1561 = vsel %vm336, %v1526, 0
        %1563 = vmatprep.subr.bf16.mxu0 0
        %1564 = vmatpush1.bf16.msra.mxu0 %v1543
        %1565 = vmatprep.subr.bf16.mxu0 0
        %1566 = vmatpush1.bf16.msra.mxu0 %v1544
        %1567 = vmatprep.subr.bf16.mxu0 0
        %1568 = vmatpush1.bf16.msra.mxu0 %v1545
        %1569 = vmatprep.subr.bf16.mxu0 0
        %1570 = vmatpush1.bf16.msra.mxu0 %v1546
        %1571 = vmatprep.subr.bf16.mxu0 0
        %1572 = vmatpush1.bf16.msra.mxu0 0
        %1573 = vmatprep.subr.bf16.mxu0 0
        %1574 = vmatpush1.bf16.msra.mxu0 0
        %1575 = vmatprep.subr.bf16.mxu0 0
        %1576 = vmatpush1.bf16.msra.mxu0 0
        %1577 = vmatprep.subr.bf16.mxu0 0
        %1578 = vmatpush1.bf16.msra.mxu0 0
        %1579 = vmatprep.subr.bf16.mxu0 0
        %1580 = vmatpush1.bf16.msra.mxu0 0
        %1581 = vmatprep.subr.bf16.mxu0 0
        %1582 = vmatpush1.bf16.msra.mxu0 0
        %1583 = vmatprep.subr.bf16.mxu0 0
        %1584 = vmatpush1.bf16.msra.mxu0 0
        %1585 = vmatprep.subr.bf16.mxu0 0
        %1586 = vmatpush1.bf16.msra.mxu0 0
        %1587 = vmatprep.subr.bf16.mxu0 0
        %1588 = vmatpush1.bf16.msra.mxu0 0
        %1589 = vmatprep.subr.bf16.mxu0 0
        %1590 = vmatpush1.bf16.msra.mxu0 0
        %1591 = vmatprep.subr.bf16.mxu0 0
        %1592 = vmatpush1.bf16.msra.mxu0 0
        %1593 = vmatprep.subr.bf16.mxu0 0
        %1594 = vmatpush1.bf16.msra.mxu0 0
        %1595 = vmatprep.mubr.bf16.mxu0 0
        %1596 = vmatmul.mubr.bf16.gmra.mrb[0].mxu0 %v1552
        %v1597 = vpop.f32.mrb[0].mxu0
        %v1598 = vadd.f32 0.0, %v1597
        %v1599 = vpop.f32.mrb[0].mxu0
        %v1600 = vpop.f32.mrb[0].mxu0
        %v1601 = vadd.f32 0.0, %v1600
        %v1602 = vpop.f32.mrb[0].mxu0
        %1603 = vmatprep.mubr.bf16.mxu0 0
        %1604 = vmatmul.mubr.bf16.gmra.mrb[0].mxu0 %v1555
        %v1605 = vpop.f32.mrb[0].mxu0
        %v1606 = vadd.f32 0.0, %v1605
        %v1607 = vpop.f32.mrb[0].mxu0
        %v1608 = vpop.f32.mrb[0].mxu0
        %v1609 = vadd.f32 0.0, %v1608
        %v1610 = vpop.f32.mrb[0].mxu0
        %1611 = vmatprep.mubr.bf16.mxu0 0
        %1612 = vmatmul.mubr.bf16.gmra.mrb[0].mxu0 %v1558
        %v1613 = vpop.f32.mrb[0].mxu0
        %v1614 = vadd.f32 0.0, %v1613
        %v1615 = vpop.f32.mrb[0].mxu0
        %v1616 = vpop.f32.mrb[0].mxu0
        %v1617 = vadd.f32 0.0, %v1616
        %v1618 = vpop.f32.mrb[0].mxu0
        %1619 = vmatprep.mubr.bf16.mxu0 0
        %1620 = vmatmul.mubr.bf16.gmra.mrb[0].mxu0 %v1561
        %v1621 = vpop.f32.mrb[0].mxu0
        %v1622 = vadd.f32 0.0, %v1621
        %v1623 = vpop.f32.mrb[0].mxu0
        %v1624 = vpop.f32.mrb[0].mxu0
        %v1625 = vadd.f32 0.0, %v1624
        %v1626 = vpop.f32.mrb[0].mxu0
        %1627 = vdwg.mxu0
        %v1628 = vadd.f32 %v1482, %v1598
        %v1629 = vadd.f32 %v1483, %v1601
        %v1630 = vadd.f32 %v1484, %v1606
        %v1631 = vadd.f32 %v1485, %v1609
        %v1632 = vadd.f32 %v1486, %v1614
        %v1633 = vadd.f32 %v1487, %v1617
        %v1634 = vadd.f32 %v1488, %v1622
        %v1635 = vadd.f32 %v1489, %v1625
        %v1636 = vld [vmem:[%s1344] sm:$0xf]
        %v1637 = vld [vmem:[%s1344 + $0x4] sm:$0x1]
        %v1638 = vld [vmem:[%s1344 + $0x8] sm:$0xf]
        %v1639 = vld [vmem:[%s1344 + $0xc] sm:$0x1]
        %v1640 = vld [vmem:[%s1344 + $0x10] sm:$0xf]
        %v1641 = vld [vmem:[%s1344 + $0x14] sm:$0x1]
        %v1642 = vld [vmem:[%s1344 + $0x18] sm:$0xf]
        %v1643 = vld [vmem:[%s1344 + $0x1c] sm:$0x1]
        %v1644 = vld [vmem:[%s1344 + $0x20] sm:$0xf]
        %v1645 = vld [vmem:[%s1344 + $0x24] sm:$0x1]
        %v1646 = vld [vmem:[%s1344 + $0x28] sm:$0xf]
        %v1647 = vld [vmem:[%s1344 + $0x2c] sm:$0x1]
        %v1648 = vld [vmem:[%s1344 + $0x30] sm:$0xf]
        %v1649 = vld [vmem:[%s1344 + $0x34] sm:$0x1]
        %v1650 = vld [vmem:[%s1344 + $0x38] sm:$0xf]
        %v1651 = vld [vmem:[%s1344 + $0x3c] sm:$0x1]
        %v1653 = vshrl.u32 %v1636, 16
        %v1655 = vrot.slane %v1653, 4
        %v1656 = vshll.u32 %v1636, 16
        %v1658 = vrot.slane %v1656, 5
        %v1659 = vor.u32 %v1655, %v1658
        %v1660 = vrot.slane %v1659, 4
        %v1662 = vshll.u32 %v1637, 16
        %v1664 = vrot.slane %v1662, 5
        %v1665 = vsel %vm553, %v1660, %v1664
        %v1667 = vshrl.u32 %v1638, 16
        %v1669 = vrot.slane %v1667, 4
        %v1670 = vshll.u32 %v1638, 16
        %v1672 = vrot.slane %v1670, 5
        %v1673 = vor.u32 %v1669, %v1672
        %v1674 = vrot.slane %v1673, 4
        %v1676 = vshll.u32 %v1639, 16
        %v1678 = vrot.slane %v1676, 5
        %v1679 = vsel %vm553, %v1674, %v1678
        %v1681 = vshrl.u32 %v1640, 16
        %v1683 = vrot.slane %v1681, 4
        %v1684 = vshll.u32 %v1640, 16
        %v1686 = vrot.slane %v1684, 5
        %v1687 = vor.u32 %v1683, %v1686
        %v1688 = vrot.slane %v1687, 4
        %v1690 = vshll.u32 %v1641, 16
        %v1692 = vrot.slane %v1690, 5
        %v1693 = vsel %vm553, %v1688, %v1692
        %v1695 = vshrl.u32 %v1642, 16
        %v1697 = vrot.slane %v1695, 4
        %v1698 = vshll.u32 %v1642, 16
        %v1700 = vrot.slane %v1698, 5
        %v1701 = vor.u32 %v1697, %v1700
        %v1702 = vrot.slane %v1701, 4
        %v1704 = vshll.u32 %v1643, 16
        %v1706 = vrot.slane %v1704, 5
        %v1707 = vsel %vm553, %v1702, %v1706
        %v1709 = vshrl.u32 %v1644, 16
        %v1711 = vrot.slane %v1709, 4
        %v1712 = vshll.u32 %v1644, 16
        %v1714 = vrot.slane %v1712, 5
        %v1715 = vor.u32 %v1711, %v1714
        %v1716 = vrot.slane %v1715, 4
        %v1718 = vshll.u32 %v1645, 16
        %v1720 = vrot.slane %v1718, 5
        %v1721 = vsel %vm553, %v1716, %v1720
        %v1723 = vshrl.u32 %v1646, 16
        %v1725 = vrot.slane %v1723, 4
        %v1726 = vshll.u32 %v1646, 16
        %v1728 = vrot.slane %v1726, 5
        %v1729 = vor.u32 %v1725, %v1728
        %v1730 = vrot.slane %v1729, 4
        %v1732 = vshll.u32 %v1647, 16
        %v1734 = vrot.slane %v1732, 5
        %v1735 = vsel %vm553, %v1730, %v1734
        %v1737 = vshrl.u32 %v1648, 16
        %v1739 = vrot.slane %v1737, 4
        %v1740 = vshll.u32 %v1648, 16
        %v1742 = vrot.slane %v1740, 5
        %v1743 = vor.u32 %v1739, %v1742
        %v1744 = vrot.slane %v1743, 4
        %v1746 = vshll.u32 %v1649, 16
        %v1748 = vrot.slane %v1746, 5
        %v1749 = vsel %vm553, %v1744, %v1748
        %v1751 = vshrl.u32 %v1650, 16
        %v1753 = vrot.slane %v1751, 4
        %v1754 = vshll.u32 %v1650, 16
        %v1756 = vrot.slane %v1754, 5
        %v1757 = vor.u32 %v1753, %v1756
        %v1758 = vrot.slane %v1757, 4
        %v1760 = vshll.u32 %v1651, 16
        %v1762 = vrot.slane %v1760, 5
        %v1763 = vsel %vm553, %v1758, %v1762
        %v1764 = vld [vmem:[%s254 + $0x100] sm:$0xf]
        %v1765 = vld [vmem:[%s254 + $0x104] sm:$0xf]
        %v1766 = vld [vmem:[%s254 + $0x108] sm:$0xf]
        %v1767 = vld [vmem:[%s254 + $0x10c] sm:$0xf]
        %v1768 = vld [vmem:[%s254 + $0x110] sm:$0xf]
        %v1769 = vld [vmem:[%s254 + $0x114] sm:$0xf]
        %v1770 = vld [vmem:[%s254 + $0x118] sm:$0xf]
        %v1771 = vld [vmem:[%s254 + $0x11c] sm:$0xf]
        %v1772 = vunpack.c.l.b16 %v1665
        %v1773 = vunpack.c.l.b16 %v1679
        %v1774 = vunpack.c.l.b16 %v1693
        %v1775 = vunpack.c.l.b16 %v1707
        %v1776 = vunpack.c.l.b16 %v1721
        %v1777 = vunpack.c.l.b16 %v1735
        %v1778 = vunpack.c.l.b16 %v1749
        %v1779 = vunpack.c.l.b16 %v1763
        %v1780 = vpack.c.b16 %v1773, %v1772
        %v1781 = vpack.c.b16 %v1775, %v1774
        %v1782 = vpack.c.b16 %v1777, %v1776
        %v1783 = vpack.c.b16 %v1779, %v1778
        %v1792 = vunpack.c.l.b16 %v1764
        %v1793 = vunpack.c.l.b16 %v1765
        %v1794 = vunpack.c.l.b16 %v1766
        %v1795 = vunpack.c.l.b16 %v1767
        %v1796 = vunpack.c.l.b16 %v1768
        %v1797 = vunpack.c.l.b16 %v1769
        %v1798 = vunpack.c.l.b16 %v1770
        %v1799 = vunpack.c.l.b16 %v1771
        %v1800 = vpack.c.b16 %v1793, %v1792
        %v1801 = vpack.c.b16 %v1795, %v1794
        %v1802 = vpack.c.b16 %v1797, %v1796
        %v1803 = vpack.c.b16 %v1799, %v1798
        %v1809 = vsel %vm336, %v1780, 0
        %v1812 = vsel %vm336, %v1781, 0
        %v1815 = vsel %vm336, %v1782, 0
        %v1818 = vsel %vm336, %v1783, 0
        %1820 = vmatprep.subr.bf16.mxu0 0
        %1821 = vmatpush1.bf16.msra.mxu0 %v1800
        %1822 = vmatprep.subr.bf16.mxu0 0
        %1823 = vmatpush1.bf16.msra.mxu0 %v1801
        %1824 = vmatprep.subr.bf16.mxu0 0
        %1825 = vmatpush1.bf16.msra.mxu0 %v1802
        %1826 = vmatprep.subr.bf16.mxu0 0
        %1827 = vmatpush1.bf16.msra.mxu0 %v1803
        %1828 = vmatprep.subr.bf16.mxu0 0
        %1829 = vmatpush1.bf16.msra.mxu0 0
        %1830 = vmatprep.subr.bf16.mxu0 0
        %1831 = vmatpush1.bf16.msra.mxu0 0
        %1832 = vmatprep.subr.bf16.mxu0 0
        %1833 = vmatpush1.bf16.msra.mxu0 0
        %1834 = vmatprep.subr.bf16.mxu0 0
        %1835 = vmatpush1.bf16.msra.mxu0 0
        %1836 = vmatprep.subr.bf16.mxu0 0
        %1837 = vmatpush1.bf16.msra.mxu0 0
        %1838 = vmatprep.subr.bf16.mxu0 0
        %1839 = vmatpush1.bf16.msra.mxu0 0
        %1840 = vmatprep.subr.bf16.mxu0 0
        %1841 = vmatpush1.bf16.msra.mxu0 0
        %1842 = vmatprep.subr.bf16.mxu0 0
        %1843 = vmatpush1.bf16.msra.mxu0 0
        %1844 = vmatprep.subr.bf16.mxu0 0
        %1845 = vmatpush1.bf16.msra.mxu0 0
        %1846 = vmatprep.subr.bf16.mxu0 0
        %1847 = vmatpush1.bf16.msra.mxu0 0
        %1848 = vmatprep.subr.bf16.mxu0 0
        %1849 = vmatpush1.bf16.msra.mxu0 0
        %1850 = vmatprep.subr.bf16.mxu0 0
        %1851 = vmatpush1.bf16.msra.mxu0 0
        %1852 = vmatprep.mubr.bf16.mxu0 0
        %1853 = vmatmul.mubr.bf16.gmra.mrb[0].mxu0 %v1809
        %v1854 = vpop.f32.mrb[0].mxu0
        %v1855 = vadd.f32 0.0, %v1854
        %v1856 = vpop.f32.mrb[0].mxu0
        %v1857 = vpop.f32.mrb[0].mxu0
        %v1858 = vadd.f32 0.0, %v1857
        %v1859 = vpop.f32.mrb[0].mxu0
        %1860 = vmatprep.mubr.bf16.mxu0 0
        %1861 = vmatmul.mubr.bf16.gmra.mrb[0].mxu0 %v1812
        %v1862 = vpop.f32.mrb[0].mxu0
        %v1863 = vadd.f32 0.0, %v1862
        %v1864 = vpop.f32.mrb[0].mxu0
        %v1865 = vpop.f32.mrb[0].mxu0
        %v1866 = vadd.f32 0.0, %v1865
        %v1867 = vpop.f32.mrb[0].mxu0
        %1868 = vmatprep.mubr.bf16.mxu0 0
        %1869 = vmatmul.mubr.bf16.gmra.mrb[0].mxu0 %v1815
        %v1870 = vpop.f32.mrb[0].mxu0
        %v1871 = vadd.f32 0.0, %v1870
        %v1872 = vpop.f32.mrb[0].mxu0
        %v1873 = vpop.f32.mrb[0].mxu0
        %v1874 = vadd.f32 0.0, %v1873
        %v1875 = vpop.f32.mrb[0].mxu0
        %1876 = vmatprep.mubr.bf16.mxu0 0
        %1877 = vmatmul.mubr.bf16.gmra.mrb[0].mxu0 %v1818
        %v1878 = vpop.f32.mrb[0].mxu0
        %v1879 = vadd.f32 0.0, %v1878
        %v1880 = vpop.f32.mrb[0].mxu0
        %v1881 = vpop.f32.mrb[0].mxu0
        %v1882 = vadd.f32 0.0, %v1881
        %v1883 = vpop.f32.mrb[0].mxu0
        %1884 = vdwg.mxu0
        %v1885 = vadd.f32 %v1628, %v1855
        %v1886 = vadd.f32 %v1629, %v1858
        %v1887 = vadd.f32 %v1630, %v1863
        %v1888 = vadd.f32 %v1631, %v1866
        %v1889 = vadd.f32 %v1632, %v1871
        %v1890 = vadd.f32 %v1633, %v1874
        %v1891 = vadd.f32 %v1634, %v1879
        %v1892 = vadd.f32 %v1635, %v1882
        %v1893 = vld [vmem:[%s257] sm:$0x1]
        %v1895 = vlaneseq
        %v1896 = vshrl.u32 %v1895, 7
        %v1897 = vsub.s32 0, %v1896
        %v1898 = vrot.slane %v1893, %v1897
        %v1900 = vadd.f32 %v1885, %v1898
        %v1901 = vadd.f32 %v1886, %v1898
        %v1902 = vadd.f32 %v1887, %v1898
        %v1903 = vadd.f32 %v1888, %v1898
        %v1904 = vadd.f32 %v1889, %v1898
        %v1905 = vadd.f32 %v1890, %v1898
        %v1906 = vadd.f32 %v1891, %v1898
        %v1907 = vadd.f32 %v1892, %v1898
        %v1908 = vadd.f32 %v1900, %v1901
        %v1909 = vadd.f32 %v1908, %v1902
        %v1910 = vadd.f32 %v1909, %v1903
        %v1911 = vadd.f32 %v1910, %v1904
        %v1912 = vadd.f32 %v1911, %v1905
        %v1913 = vadd.f32 %v1912, %v1906
        %v1914 = vadd.f32 %v1913, %v1907
        %v1915 = vrot.slane %v1914, 4
        %v1916 = vadd.f32 %v1914, %v1915
        %v1917 = vrot.slane %v1916, 2
        %v1918 = vadd.f32 %v1916, %v1917
        %v1919 = vrot.slane %v1918, 1
        %v1920 = vadd.f32 %v1918, %v1919
        %v1921 = vmul.f32 %v1920, 0.015625
        %1922 = vst [vmem:[%s243] sm:$0x1] %v1921
        %v1923 = vmax.f32 %v1900, 0.0
        %v1924 = vmax.f32 %v1901, 0.0
        %v1925 = vmax.f32 %v1902, 0.0
        %v1926 = vmax.f32 %v1903, 0.0
        %v1927 = vmax.f32 %v1904, 0.0
        %v1928 = vmax.f32 %v1905, 0.0
        %v1929 = vmax.f32 %v1906, 0.0
        %v1930 = vmax.f32 %v1907, 0.0
        %v1931 = vpack.c.bf16 %v1924, %v1923
        %v1932 = vpack.c.bf16 %v1926, %v1925
        %v1933 = vpack.c.bf16 %v1928, %v1927
        %v1934 = vpack.c.bf16 %v1930, %v1929
        %v1939 = vunpack.c.l.b16 %v1931
        %v1940 = vunpack.c.h.b16 %v1931
        %v1941 = vunpack.c.l.b16 %v1932
        %v1942 = vunpack.c.h.b16 %v1932
        %v1943 = vunpack.c.l.b16 %v1933
        %v1944 = vunpack.c.h.b16 %v1933
        %v1945 = vunpack.c.l.b16 %v1934
        %v1946 = vunpack.c.h.b16 %v1934
        %v1947 = vpack.c.b16 %v1939, %v1939
        %v1948 = vpack.c.b16 %v1940, %v1940
        %v1949 = vpack.c.b16 %v1941, %v1941
        %v1950 = vpack.c.b16 %v1942, %v1942
        %v1951 = vpack.c.b16 %v1943, %v1943
        %v1952 = vpack.c.b16 %v1944, %v1944
        %v1953 = vpack.c.b16 %v1945, %v1945
        %v1954 = vpack.c.b16 %v1946, %v1946
        %1963 = vst [vmem:[%s237] sm:$0xf] %v1947
        %1964 = vst [vmem:[%s237 + $0x4] sm:$0xf] %v1948
        %1965 = vst [vmem:[%s237 + $0x8] sm:$0xf] %v1949
        %1966 = vst [vmem:[%s237 + $0xc] sm:$0xf] %v1950
        %1967 = vst [vmem:[%s237 + $0x10] sm:$0xf] %v1951
        %1968 = vst [vmem:[%s237 + $0x14] sm:$0xf] %v1952
        %1969 = vst [vmem:[%s237 + $0x18] sm:$0xf] %v1953
        %1970 = vst [vmem:[%s237 + $0x1c] sm:$0xf] %v1954
        %s1971 = sand.u32 %s122, 1
        %s1972 = scalar_lea.sflag [#allocation3], %s1971
        %s1973 = sand.u32 %s122, 1
        %s1974 = smul.addr %s1973, 32
        %s1975 = scalar_lea.vmem [#allocation2], %s1974
        %s1976 = sand.u32 %s150, 1
        %s1977 = scalar_lea.sflag [#allocation5], %s1976
        %s1978 = sand.u32 %s150, 1
        %s1979 = scalar_lea.vmem [#allocation4], %s1978
        // Predicated region
        $region33: #{tpu_custom_call.1} parent=31 // pred_check
          %p1980 = pneg %p132
        $region34: #{tpu_custom_call.1} parent=31 // pred_check_branch
          %1982 = sbr.rel (%p1980) target = $region36
        $region35: #{tpu_custom_call.1} parent=31 // pred_region
          %s1984 = ssub.s32 512, 512
          %1985 = vsyncadd %s1972, %s1984
          %s1986 = smul.addr %s26, 8
          %s1987 = sadd.s32 %s27, %s1986
          %s1988 = smul.addr %s1987, 64
          %s1989 = scalar_lea.hbm %s3, %s1988
          %s1990 = sshll.u32 %s1975, 4
          %s1991 = int_to_ptr.vmem [resolvable:$true] %s1990
          %1996 = dma.vmem_to_hbm [thread:$0]  %s1991, 512, %s1989, %s1972, 64, 64, 4
        $region36: #{tpu_custom_call.1} parent=31 // pred_fallthru
          _
        // Predicated region
        $region37: #{tpu_custom_call.1} parent=31 // pred_check
          %p1997 = pneg %p160
        $region38: #{tpu_custom_call.1} parent=31 // pred_check_branch
          %1999 = sbr.rel (%p1997) target = $region40
        $region39: #{tpu_custom_call.1} parent=31 // pred_region
          %s2001 = ssub.s32 16, 16
          %2002 = vsyncadd %s1977, %s2001
          %s2003 = sadd.s32 %s27, %s26
          %s2004 = smul.addr %s2003, 16
          %s2005 = scalar_lea.hbm %s4, %s2004
          %s2007 = sshll.u32 %s1979, 4
          %s2008 = int_to_ptr.vmem [resolvable:$true] %s2007
          %2010 = dma.vmem_to_hbm [thread:$0]  %s2008, 16, %s2005, %s1977
        $region40: #{tpu_custom_call.1} parent=31 // pred_fallthru
          _
      $region32: #{tpu_custom_call.1} parent=5 // pred_fallthru
        _
      %p2011 = scmp.le.s32.totalorder 2, %s17
      // Predicated region
      $region41: #{tpu_custom_call.1} parent=5 // pred_check
        %p2012 = pneg %p2011
      $region42: #{tpu_custom_call.1} parent=5 // pred_check_branch
        %2014 = sbr.rel (%p2012) target = $region44
      $region43: #{tpu_custom_call.1} parent=5 // pred_region
        %s2015 = ssub.s32 %s17, 2
        // Predicated region
        $region45: #{tpu_custom_call.1} parent=43 // pred_check
          %p2016 = pneg %p138
        $region46: #{tpu_custom_call.1} parent=43 // pred_check_branch
          %2018 = sbr.rel (%p2016) target = $region48
        $region47: #{tpu_custom_call.1} parent=43 // pred_region
          %s2019 = sand.u32 %s123, 1
          %s2020 = scalar_lea.sflag [#allocation3], %s2019
          %s2021 = sand.u32 %s123, 1
          %s2022 = smul.addr %s2021, 32
          %s2023 = scalar_lea.vmem [#allocation2], %s2022
          %2024 = dma.done %s2020, 512
        $region48: #{tpu_custom_call.1} parent=43 // pred_fallthru
          _
        // Predicated region
        $region49: #{tpu_custom_call.1} parent=43 // pred_check
          %p2025 = pneg %p166
        $region50: #{tpu_custom_call.1} parent=43 // pred_check_branch
          %2027 = sbr.rel (%p2025) target = $region52
        $region51: #{tpu_custom_call.1} parent=43 // pred_region
          %s2028 = sand.u32 %s151, 1
          %s2029 = scalar_lea.sflag [#allocation5], %s2028
          %s2030 = sand.u32 %s151, 1
          %s2031 = scalar_lea.vmem [#allocation4], %s2030
          %2032 = dma.done %s2029, 16
        $region52: #{tpu_custom_call.1} parent=43 // pred_fallthru
          _
      $region44: #{tpu_custom_call.1} parent=5 // pred_fallthru
        _
    $region6: #{tpu_custom_call.1} parent=1 // loop_footer
      %s21 = sadd.s32 1, %s17
    $region7: #{tpu_custom_call.1} parent=1 // loop_footer_branch
      %16 = sbr.rel target = $region3
    $region8: #{tpu_custom_call.1} parent=1 // loop_exit
      _
    %2033 = vsyncpa [#allocation3], 1
    %s2034 = scalar_lea.sflag [#allocation3], 1
    %2035 = vsyncpa %s2034, 1
    %2036 = vsyncpa [#allocation5], 1
    %s2037 = scalar_lea.sflag [#allocation5], 1
    %2038 = vsyncpa %s2037, 1

</llo_original>
